<compile_context>
chip_gen: v6e
topology: v6e:2x2x1
jax: 0.10.0
libtpu: 0.0.40
codegen_flags: <defaults>
</compile_context>

<pallas_src>
from collections import OrderedDict

import jax
import jax.numpy as jnp
from jax.experimental import pallas as pl
from jax.experimental.pallas import tpu as pltpu

PAD = 128                    # lane width: every matmul is (rows,128)@(128,128)
CUM_STRIDES = (1, 2, 4, 8)   # cumulative spatial stride after layer1..layer4


# ----------------------------------------------------------------------------
# Fused Pallas kernel: 4x (1x1 conv + bias + ReLU), stride applied in-kernel
# ----------------------------------------------------------------------------
def _make_kernel(C, tile_h, W, emit):
    """Build the fused 4-stage kernel for one (batch, row-tile) grid step."""
    n_out = sum(emit)
    out_pos = {}
    for k in range(4):
        if emit[k]:
            out_pos[k] = len(out_pos)

    def downsample(src_ref, dst_ref, h, w):
        # stride-2 spatial subsample of a row-major (h*w, 128) f32 buffer
        h2, w2 = h // 2, w // 2
        for i in range(h2):                                # static, unrolled
            row = src_ref[pl.ds(2 * i * w, w2, 2), :]      # every other pixel
            dst_ref[pl.ds(i * w2, w2), :] = row            # of image row 2*i

    def kernel(x_ref, w_ref, b_ref, *rest):
        out_refs = rest[:n_out]
        big_ref, d2_ref, d3_ref, d4_ref = rest[n_out:]

        def stage(x_bf, k):
            acc = jnp.dot(x_bf, w_ref[k], preferred_element_type=jnp.float32)
            acc = acc + b_ref[pl.ds(k, 1), :]              # (rows,128)+(1,128)
            return jnp.maximum(acc, 0.0)                   # f32 epilogue

        def emit_out(k, y):
            if emit[k]:
                out_refs[out_pos[k]][0] = y.astype(jnp.bfloat16)

        # zero-pad the C real input channels to 128 lanes, once, in VMEM
        big_ref[...] = jnp.zeros_like(big_ref)
        big_ref[:, 0:C] = x_ref[0].astype(jnp.float32)

        # layer1 (stride 1) at full tile resolution
        y1 = stage(big_ref[...].astype(jnp.bfloat16), 0)
        emit_out(0, y1)
        big_ref[...] = y1
        downsample(big_ref, d2_ref, tile_h, W)

        # layer2 (stride 2): runs on 1/4 of the rows
        y2 = stage(d2_ref[...].astype(jnp.bfloat16), 1)
        emit_out(1, y2)
        d2_ref[...] = y2
        downsample(d2_ref, d3_ref, tile_h // 2, W // 2)

        # layer3 (stride 2): 1/16 of the rows
        y3 = stage(d3_ref[...].astype(jnp.bfloat16), 2)
        emit_out(2, y3)
        d3_ref[...] = y3
        downsample(d3_ref, d4_ref, tile_h // 4, W // 4)

        # layer4 (stride 2): 1/64 of the rows (always returned)
        y4 = stage(d4_ref[...].astype(jnp.bfloat16), 3)
        emit_out(3, y4)

    return kernel


def _choose_tile_h(H, W, max_tile_rows=16384):
    """Row-tile height: multiple of 8 (cum stride), divides H, keeps every
    per-layer output block sublane-aligned (16 rows for bf16) or full-extent,
    and keeps per-tile VMEM bounded."""
    candidates = []
    for t in range(8, H + 1, 8):
        if H % t:
            continue
        if t == H or ((t // 8) * (W // 8)) % 16 == 0:
            candidates.append(t)
    if not candidates:
        candidates = [H]
    fitting = [t for t in candidates if t * W <= max_tile_rows]
    return max(fitting) if fitting else min(candidates)


def fused_backbone_pallas(x_rows, w_stack, b_stack, H, W, emit):
    """x_rows: (B, H*W, C) bf16 (row-major NHWC rows, compact channels).
    w_stack: (4,128,128) bf16 zero-padded weights; b_stack: (4,128) f32.
    Returns one lane-dense bf16 (B, H*W/s^2, 128) array per emitted layer."""
    B, HW, C = x_rows.shape
    assert HW == H * W
    tile_h = _choose_tile_h(H, W)
    tile_rows = tile_h * W
    n_tiles = H // tile_h

    out_shape, out_specs, blk_rows = [], [], []
    for k in range(4):
        if not emit[k]:
            continue
        s2 = CUM_STRIDES[k] ** 2
        out_shape.append(jax.ShapeDtypeStruct((B, HW // s2, PAD), jnp.bfloat16))
        out_specs.append(pl.BlockSpec((1, tile_rows // s2, PAD),
                                      lambda b, t: (b, t, 0)))
        blk_rows.append(tile_rows // s2)

    in_specs = [
        pl.BlockSpec((1, tile_rows, C), lambda b, t: (b, t, 0)),   # compact x
        pl.BlockSpec((4, PAD, PAD), lambda b, t: (0, 0, 0)),       # weights
        pl.BlockSpec((4, PAD), lambda b, t: (0, 0)),               # biases
    ]
    scratch_shapes = [
        pltpu.VMEM((tile_rows, PAD), jnp.float32),        # padded x / y1 stage
        pltpu.VMEM((tile_rows // 4, PAD), jnp.float32),   # x2 / y2
        pltpu.VMEM((tile_rows // 16, PAD), jnp.float32),  # x3 / y3
        pltpu.VMEM((tile_rows // 64, PAD), jnp.float32),  # x4
    ]

    # roofline hints for XLA's scheduler around the custom call
    flops = int(2 * B * HW * PAD * PAD *
                sum(1.0 / (s * s) for s in CUM_STRIDES))
    bytes_out = sum(B * (HW // (CUM_STRIDES[k] ** 2)) * PAD * 2
                    for k in range(4) if emit[k])
    bytes_accessed = int(B * HW * C * 2 + int(w_stack.size) * 2
                         + int(b_stack.size) * 4 + bytes_out)

    # conservative scoped-VMEM request (double-buffered blocks + scratch)
    blk_bytes = 2 * (tile_rows * C * 2 + 4 * PAD * PAD * 2 + 4 * PAD * 4)
    blk_bytes += 2 * sum(r * PAD * 2 for r in blk_rows)
    scr_bytes = sum(tile_rows // f * PAD * 4 for f in (1, 4, 16, 64))
    vmem_limit = int(min(48 * 1024 * 1024,
                         max(32 * 1024 * 1024, 2 * (blk_bytes + scr_bytes))))

    kernel = _make_kernel(C, tile_h, W, emit)
    return pl.pallas_call(
        kernel,
        out_shape=tuple(out_shape),
        grid=(B, n_tiles),
        in_specs=in_specs,
        out_specs=tuple(out_specs),
        scratch_shapes=scratch_shapes,
        compiler_params=pltpu.CompilerParams(
            dimension_semantics=("parallel", "parallel"),
            vmem_limit_bytes=vmem_limit),
        cost_estimate=pl.CostEstimate(
            flops=flops, transcendentals=0, bytes_accessed=bytes_accessed),
    )(x_rows, w_stack, b_stack)


# ----------------------------------------------------------------------------
# Synthetic backbone body (layer1..layer4), IntermediateLayerGetter semantics
# ----------------------------------------------------------------------------
def init_backbone_params(key, in_channels):
    """Deterministic parameter init for 4 stages of strided 1x1 conv."""
    params = []
    c_in = in_channels
    cfg = [(8, 1), (16, 2), (32, 2), (64, 2)]        # (out_channels, stride)
    for c_out, stride in cfg:
        key, kw, kb = jax.random.split(key, 3)
        scale = (2.0 / c_in) ** 0.5
        w = jax.random.normal(kw, (c_in, c_out), dtype=jnp.float32) * scale
        b = jax.random.normal(kb, (c_out,), dtype=jnp.float32) * 0.01
        params.append({"w": w, "b": b, "stride": stride})
        c_in = c_out
    return params, c_in                               # layer4 num_channels


def interpolate_mask_nearest(mask, h, w):
    """F.interpolate(m[None].float(), size=(h,w), mode='nearest').to(bool)[0]."""
    B, H, W = mask.shape
    if H % h == 0 and W % w == 0:
        return mask[:, :: H // h, :: W // w]          # cheap strided slice
    rows = (jnp.arange(h) * H) // h
    cols = (jnp.arange(w) * W) // w
    return mask[:, rows][:, :, cols]


class BackboneBasePallas:
    """Mirrors BackboneBase.forward.

    forward(tensors, mask):
      tensors: (B, C, H, W) float32  (NCHW, PyTorch convention)
      mask:    (B, H, W) bool
    returns OrderedDict[name -> (feature NCHW (bf16), mask at feature HxW)]
    """

    def __init__(self, params, num_channels, return_interm_layers):
        self.params = params
        self.num_channels = num_channels
        self.out_channels = [p["w"].shape[1] for p in params]
        cum, c = [], 1
        for p in params:
            c *= p["stride"]
            cum.append(c)
        assert tuple(cum) == CUM_STRIDES
        self.cum_strides = cum

        # lane-dense zero-padded parameters, weights cast to bf16 for the MXU
        w_stack, b_stack = [], []
        for p in params:
            cin, cout = p["w"].shape
            w_stack.append(jnp.zeros((PAD, PAD), jnp.float32)
                           .at[:cin, :cout].set(p["w"]))
            b_stack.append(jnp.zeros((PAD,), jnp.float32)
                           .at[:cout].set(p["b"]))
        self.w_stack = jnp.stack(w_stack).astype(jnp.bfloat16)  # (4,128,128)
        self.b_stack = jnp.stack(b_stack)                       # (4,128) f32

        if return_interm_layers:
            # {'layer1':'0', 'layer2':'1', 'layer3':'2', 'layer4':'3'}
            self.return_layers = {0: "0", 1: "1", 2: "2", 3: "3"}
        else:
            # {'layer4':'0'}
            self.return_layers = {3: "0"}
        self.emit = tuple(k in self.return_layers for k in range(4))

    def forward(self, tensors_nchw, mask):
        B, C, H, W = tensors_nchw.shape
        assert H % CUM_STRIDES[-1] == 0 and W % CUM_STRIDES[-1] == 0, (
            "H and W must be divisible by the layer4 cumulative stride (8)")
        # boundary layout glue only: NCHW -> NHWC rows, compact channels, bf16
        x = jnp.transpose(tensors_nchw, (0, 2, 3, 1)).reshape(B, H * W, C)
        x = x.astype(jnp.bfloat16)

        outs = fused_backbone_pallas(x, self.w_stack, self.b_stack, H, W,
                                     self.emit)

        out = OrderedDict()
        oi = 0
        for li in range(4):
            if not self.emit[li]:
                continue
            name = self.return_layers[li]
            s = self.cum_strides[li]
            h, w = H // s, W // s
            cout = self.out_channels[li]
            feat = outs[oi].reshape(B, h, w, PAD)[..., :cout]
            feat = jnp.transpose(feat, (0, 3, 1, 2))      # NHWC -> NCHW
            out[name] = (feat, interpolate_mask_nearest(mask, h, w))
            oi += 1
        return out


# ----------------------------------------------------------------------------
# Pure-JAX reference (per-stage strided 1x1 conv) for correctness checking
# ----------------------------------------------------------------------------
def reference_forward(x_nchw, params):
    """Mirrors the kernel's numerics: bf16 inputs/weights, f32 accumulation,
    bf16 activations propagated between stages."""
    x = jnp.transpose(x_nchw, (0, 2, 3, 1)).astype(jnp.bfloat16)
    feats = []
    for p in params:
        s = p["stride"]
        x = x[:, ::s, ::s, :]
        y = jnp.einsum("bhwc,cd->bhwd", x, p["w"].astype(jnp.bfloat16),
                       preferred_element_type=jnp.float32) + p["b"]
        y = jnp.maximum(y, 0.0)
        feats.append(jnp.transpose(y, (0, 3, 1, 2)))      # f32 NCHW
        x = y.astype(jnp.bfloat16)
    return feats


if __name__ == "__main__":
    key = jax.random.PRNGKey(0)
    k_params, k_x, k_m = jax.random.split(key, 3)

    B, C, H, W = 2, 4, 16, 16
    params, num_channels = init_backbone_params(k_params, C)

    x = jax.random.normal(k_x, (B, C, H, W), dtype=jnp.float32)
    # padding mask, as in NestedTensor: True = padded pixel
    mask = jax.random.bernoulli(k_m, p=0.3, shape=(B, H, W))

    refs = reference_forward(x, params)

    # --- all intermediate layers returned ---------------------------------
    model = BackboneBasePallas(params, num_channels, return_interm_layers=True)
    out = model.forward(x, mask)
    assert list(out.keys()) == ["0", "1", "2", "3"]
    for name, (feat, m) in out.items():
        feat = jax.block_until_ready(feat)
        m = jax.block_until_ready(m)
        li = int(name)
        s = CUM_STRIDES[li]
        ref = refs[li]
        assert feat.shape == ref.shape, (feat.shape, ref.shape)
        assert m.shape == (B, H // s, W // s) and m.dtype == jnp.bool_
        assert bool(jnp.array_equal(m, mask[:, ::s, ::s]))
        assert bool(jnp.allclose(feat.astype(jnp.float32), ref,
                                 rtol=2e-2, atol=2e-2))

    # --- layer4-only path ---------------------------------------------------
    model4 = BackboneBasePallas(params, num_channels,
                                return_interm_layers=False)
    out4 = model4.forward(x, mask)
    assert list(out4.keys()) == ["0"]
    feat4, m4 = out4["0"]
    feat4 = jax.block_until_ready(feat4)
    assert feat4.shape == (B, 64, 2, 2)
    assert m4.shape == (B, 2, 2)
    assert bool(jnp.allclose(feat4.astype(jnp.float32), refs[3],
                             rtol=2e-2, atol=2e-2))

    print("KERNEL_OK")
</pallas_src>

<mosaic_0001>
module attributes {stable_mosaic.version = 11 : i64} {
  func.func @kernel(%arg0: i32, %arg1: i32, %arg2: memref<1x256x4xbf16, #tpu.memory_space<vmem>>, %arg3: memref<4x128x128xbf16, #tpu.memory_space<vmem>>, %arg4: memref<4x128xf32, #tpu.memory_space<vmem>>, %arg5: memref<1x256x128xbf16, #tpu.memory_space<vmem>>, %arg6: memref<1x64x128xbf16, #tpu.memory_space<vmem>>, %arg7: memref<1x16x128xbf16, #tpu.memory_space<vmem>>, %arg8: memref<1x4x128xbf16, #tpu.memory_space<vmem>>, %arg9: memref<256x128xf32, #tpu.memory_space<vmem>>, %arg10: memref<64x128xf32, #tpu.memory_space<vmem>>, %arg11: memref<16x128xf32, #tpu.memory_space<vmem>>, %arg12: memref<4x128xf32, #tpu.memory_space<vmem>>) attributes {dimension_semantics = [#tpu.dimension_semantics<parallel>, #tpu.dimension_semantics<parallel>], iteration_bounds = array<i64: 2, 1>, scalar_prefetch = 0 : i64, scratch_operands = 4 : i64, tpu.core_type = #tpu.core_type<tc>, window_params = [{transform_indices = @transform_0, window_bounds = array<i64: 1, 256, 4>}, {pipeline_mode = #tpu.pipeline_mode<synchronous>, transform_indices = @transform_1, window_bounds = array<i64: 4, 128, 128>}, {pipeline_mode = #tpu.pipeline_mode<synchronous>, transform_indices = @transform_2, window_bounds = array<i64: 4, 128>}, {transform_indices = @transform_3, window_bounds = array<i64: 1, 256, 128>}, {transform_indices = @transform_4, window_bounds = array<i64: 1, 64, 128>}, {transform_indices = @transform_5, window_bounds = array<i64: 1, 16, 128>}, {transform_indices = @transform_6, window_bounds = array<i64: 1, 4, 128>}]} {
    %cst = arith.constant 0.000000e+00 : f32
    %0 = vector.broadcast %cst : f32 to vector<256x128xf32>
    %c0 = arith.constant 0 : index
    %c0_0 = arith.constant 0 : index
    %1 = vector.load %arg9[%c0, %c0_0] : memref<256x128xf32, #tpu.memory_space<vmem>>, vector<256x128xf32>
    tpu.vector_store %arg9[%c0, %c0_0], %0 {strides = array<i32>} : memref<256x128xf32, #tpu.memory_space<vmem>>, vector<256x128xf32>,
    %c0_1 = arith.constant 0 : index
    %c0_2 = arith.constant 0 : index
    %c0_3 = arith.constant 0 : index
    %2 = vector.load %arg2[%c0_1, %c0_2, %c0_3] : memref<1x256x4xbf16, #tpu.memory_space<vmem>>, vector<1x256x4xbf16>
    %3 = vector.shape_cast %2 : vector<1x256x4xbf16> to vector<256x4xbf16>
    %4 = arith.extf %3 : vector<256x4xbf16> to vector<256x4xf32>
    %c0_4 = arith.constant 0 : index
    %c0_5 = arith.constant 0 : index
    %5 = vector.load %arg9[%c0_4, %c0_5] : memref<256x128xf32, #tpu.memory_space<vmem>>, vector<256x4xf32>
    tpu.vector_store %arg9[%c0_4, %c0_5], %4 {strides = array<i32>} : memref<256x128xf32, #tpu.memory_space<vmem>>, vector<256x4xf32>,
    %c0_6 = arith.constant 0 : index
    %c0_7 = arith.constant 0 : index
    %6 = vector.load %arg9[%c0_6, %c0_7] : memref<256x128xf32, #tpu.memory_space<vmem>>, vector<256x128xf32>
    %7 = arith.truncf %6 : vector<256x128xf32> to vector<256x128xbf16>
    %c0_8 = arith.constant 0 : index
    %c0_9 = arith.constant 0 : index
    %c0_10 = arith.constant 0 : index
    %8 = vector.load %arg3[%c0_8, %c0_9, %c0_10] : memref<4x128x128xbf16, #tpu.memory_space<vmem>>, vector<1x128x128xbf16>
    %9 = vector.shape_cast %8 : vector<1x128x128xbf16> to vector<128x128xbf16>
    %cst_11 = arith.constant dense<0.000000e+00> : vector<256x128xf32>
    %10 = tpu.matmul %7, %9, %cst_11 {dimension_numbers = #tpu.dot_dimension_numbers<[1], [0], [0], [1], [0, 0, 1, 1], [], []>} : vector<256x128xbf16>, vector<128x128xbf16>, vector<256x128xf32> -> vector<256x128xf32>
    %c0_12 = arith.constant 0 : index
    %c0_13 = arith.constant 0 : index
    %11 = vector.load %arg4[%c0_12, %c0_13] : memref<4x128xf32, #tpu.memory_space<vmem>>, vector<1x128xf32>
    %12 = vector.broadcast %11 : vector<1x128xf32> to vector<256x128xf32>
    %13 = arith.addf %10, %12 : vector<256x128xf32>
    %cst_14 = arith.constant 0.000000e+00 : f32
    %14 = vector.broadcast %cst_14 : f32 to vector<256x128xf32>
    %15 = arith.maximumf %13, %14 : vector<256x128xf32>
    %16 = arith.truncf %15 : vector<256x128xf32> to vector<256x128xbf16>
    %c0_15 = arith.constant 0 : index
    %c0_16 = arith.constant 0 : index
    %c0_17 = arith.constant 0 : index
    %17 = vector.load %arg5[%c0_15, %c0_16, %c0_17] : memref<1x256x128xbf16, #tpu.memory_space<vmem>>, vector<1x256x128xbf16>
    %18 = vector.shape_cast %17 : vector<1x256x128xbf16> to vector<256x128xbf16>
    %19 = vector.shape_cast %16 : vector<256x128xbf16> to vector<1x256x128xbf16>
    tpu.vector_store %arg5[%c0_15, %c0_16, %c0_17], %19 {strides = array<i32>} : memref<1x256x128xbf16, #tpu.memory_space<vmem>>, vector<1x256x128xbf16>,
    %c0_18 = arith.constant 0 : index
    %c0_19 = arith.constant 0 : index
    %20 = vector.load %arg9[%c0_18, %c0_19] : memref<256x128xf32, #tpu.memory_space<vmem>>, vector<256x128xf32>
    tpu.vector_store %arg9[%c0_18, %c0_19], %15 {strides = array<i32>} : memref<256x128xf32, #tpu.memory_space<vmem>>, vector<256x128xf32>,
    %c0_20 = arith.constant 0 : index
    %c0_21 = arith.constant 0 : index
    %21 = tpu.strided_load %arg9[%c0_20, %c0_21] {strides = array<i32: 2, 1>} : memref<256x128xf32, #tpu.memory_space<vmem>>, vector<8x128xf32>
    %c0_22 = arith.constant 0 : index
    %c0_23 = arith.constant 0 : index
    %22 = vector.load %arg10[%c0_22, %c0_23] : memref<64x128xf32, #tpu.memory_space<vmem>>, vector<8x128xf32>
    tpu.vector_store %arg10[%c0_22, %c0_23], %21 {strides = array<i32>} : memref<64x128xf32, #tpu.memory_space<vmem>>, vector<8x128xf32>,
    %c32 = arith.constant 32 : index
    %c0_24 = arith.constant 0 : index
    %23 = tpu.strided_load %arg9[%c32, %c0_24] {strides = array<i32: 2, 1>} : memref<256x128xf32, #tpu.memory_space<vmem>>, vector<8x128xf32>
    %c8 = arith.constant 8 : index
    %c0_25 = arith.constant 0 : index
    %24 = vector.load %arg10[%c8, %c0_25] : memref<64x128xf32, #tpu.memory_space<vmem>>, vector<8x128xf32>
    tpu.vector_store %arg10[%c8, %c0_25], %23 {strides = array<i32>} : memref<64x128xf32, #tpu.memory_space<vmem>>, vector<8x128xf32>,
    %c64 = arith.constant 64 : index
    %c0_26 = arith.constant 0 : index
    %25 = tpu.strided_load %arg9[%c64, %c0_26] {strides = array<i32: 2, 1>} : memref<256x128xf32, #tpu.memory_space<vmem>>, vector<8x128xf32>
    %c16 = arith.constant 16 : index
    %c0_27 = arith.constant 0 : index
    %26 = vector.load %arg10[%c16, %c0_27] : memref<64x128xf32, #tpu.memory_space<vmem>>, vector<8x128xf32>
    tpu.vector_store %arg10[%c16, %c0_27], %25 {strides = array<i32>} : memref<64x128xf32, #tpu.memory_space<vmem>>, vector<8x128xf32>,
    %c96 = arith.constant 96 : index
    %c0_28 = arith.constant 0 : index
    %27 = tpu.strided_load %arg9[%c96, %c0_28] {strides = array<i32: 2, 1>} : memref<256x128xf32, #tpu.memory_space<vmem>>, vector<8x128xf32>
    %c24 = arith.constant 24 : index
    %c0_29 = arith.constant 0 : index
    %28 = vector.load %arg10[%c24, %c0_29] : memref<64x128xf32, #tpu.memory_space<vmem>>, vector<8x128xf32>
    tpu.vector_store %arg10[%c24, %c0_29], %27 {strides = array<i32>} : memref<64x128xf32, #tpu.memory_space<vmem>>, vector<8x128xf32>,
    %c128 = arith.constant 128 : index
    %c0_30 = arith.constant 0 : index
    %29 = tpu.strided_load %arg9[%c128, %c0_30] {strides = array<i32: 2, 1>} : memref<256x128xf32, #tpu.memory_space<vmem>>, vector<8x128xf32>
    %c32_31 = arith.constant 32 : index
    %c0_32 = arith.constant 0 : index
    %30 = vector.load %arg10[%c32_31, %c0_32] : memref<64x128xf32, #tpu.memory_space<vmem>>, vector<8x128xf32>
    tpu.vector_store %arg10[%c32_31, %c0_32], %29 {strides = array<i32>} : memref<64x128xf32, #tpu.memory_space<vmem>>, vector<8x128xf32>,
    %c160 = arith.constant 160 : index
    %c0_33 = arith.constant 0 : index
    %31 = tpu.strided_load %arg9[%c160, %c0_33] {strides = array<i32: 2, 1>} : memref<256x128xf32, #tpu.memory_space<vmem>>, vector<8x128xf32>
    %c40 = arith.constant 40 : index
    %c0_34 = arith.constant 0 : index
    %32 = vector.load %arg10[%c40, %c0_34] : memref<64x128xf32, #tpu.memory_space<vmem>>, vector<8x128xf32>
    tpu.vector_store %arg10[%c40, %c0_34], %31 {strides = array<i32>} : memref<64x128xf32, #tpu.memory_space<vmem>>, vector<8x128xf32>,
    %c192 = arith.constant 192 : index
    %c0_35 = arith.constant 0 : index
    %33 = tpu.strided_load %arg9[%c192, %c0_35] {strides = array<i32: 2, 1>} : memref<256x128xf32, #tpu.memory_space<vmem>>, vector<8x128xf32>
    %c48 = arith.constant 48 : index
    %c0_36 = arith.constant 0 : index
    %34 = vector.load %arg10[%c48, %c0_36] : memref<64x128xf32, #tpu.memory_space<vmem>>, vector<8x128xf32>
    tpu.vector_store %arg10[%c48, %c0_36], %33 {strides = array<i32>} : memref<64x128xf32, #tpu.memory_space<vmem>>, vector<8x128xf32>,
    %c224 = arith.constant 224 : index
    %c0_37 = arith.constant 0 : index
    %35 = tpu.strided_load %arg9[%c224, %c0_37] {strides = array<i32: 2, 1>} : memref<256x128xf32, #tpu.memory_space<vmem>>, vector<8x128xf32>
    %c56 = arith.constant 56 : index
    %c0_38 = arith.constant 0 : index
    %36 = vector.load %arg10[%c56, %c0_38] : memref<64x128xf32, #tpu.memory_space<vmem>>, vector<8x128xf32>
    tpu.vector_store %arg10[%c56, %c0_38], %35 {strides = array<i32>} : memref<64x128xf32, #tpu.memory_space<vmem>>, vector<8x128xf32>,
    %c0_39 = arith.constant 0 : index
    %c0_40 = arith.constant 0 : index
    %37 = vector.load %arg10[%c0_39, %c0_40] : memref<64x128xf32, #tpu.memory_space<vmem>>, vector<64x128xf32>
    %38 = arith.truncf %37 : vector<64x128xf32> to vector<64x128xbf16>
    %c1 = arith.constant 1 : index
    %c0_41 = arith.constant 0 : index
    %c0_42 = arith.constant 0 : index
    %39 = vector.load %arg3[%c1, %c0_41, %c0_42] : memref<4x128x128xbf16, #tpu.memory_space<vmem>>, vector<1x128x128xbf16>
    %40 = vector.shape_cast %39 : vector<1x128x128xbf16> to vector<128x128xbf16>
    %cst_43 = arith.constant dense<0.000000e+00> : vector<64x128xf32>
    %41 = tpu.matmul %38, %40, %cst_43 {dimension_numbers = #tpu.dot_dimension_numbers<[1], [0], [0], [1], [0, 0, 1, 1], [], []>} : vector<64x128xbf16>, vector<128x128xbf16>, vector<64x128xf32> -> vector<64x128xf32>
    %c1_44 = arith.constant 1 : index
    %c0_45 = arith.constant 0 : index
    %42 = vector.load %arg4[%c1_44, %c0_45] : memref<4x128xf32, #tpu.memory_space<vmem>>, vector<1x128xf32>
    %43 = vector.broadcast %42 : vector<1x128xf32> to vector<64x128xf32>
    %44 = arith.addf %41, %43 : vector<64x128xf32>
    %cst_46 = arith.constant 0.000000e+00 : f32
    %45 = vector.broadcast %cst_46 : f32 to vector<64x128xf32>
    %46 = arith.maximumf %44, %45 : vector<64x128xf32>
    %47 = arith.truncf %46 : vector<64x128xf32> to vector<64x128xbf16>
    %c0_47 = arith.constant 0 : index
    %c0_48 = arith.constant 0 : index
    %c0_49 = arith.constant 0 : index
    %48 = vector.load %arg6[%c0_47, %c0_48, %c0_49] : memref<1x64x128xbf16, #tpu.memory_space<vmem>>, vector<1x64x128xbf16>
    %49 = vector.shape_cast %48 : vector<1x64x128xbf16> to vector<64x128xbf16>
    %50 = vector.shape_cast %47 : vector<64x128xbf16> to vector<1x64x128xbf16>
    tpu.vector_store %arg6[%c0_47, %c0_48, %c0_49], %50 {strides = array<i32>} : memref<1x64x128xbf16, #tpu.memory_space<vmem>>, vector<1x64x128xbf16>,
    %c0_50 = arith.constant 0 : index
    %c0_51 = arith.constant 0 : index
    %51 = vector.load %arg10[%c0_50, %c0_51] : memref<64x128xf32, #tpu.memory_space<vmem>>, vector<64x128xf32>
    tpu.vector_store %arg10[%c0_50, %c0_51], %46 {strides = array<i32>} : memref<64x128xf32, #tpu.memory_space<vmem>>, vector<64x128xf32>,
    %c0_52 = arith.constant 0 : index
    %c0_53 = arith.constant 0 : index
    %52 = tpu.strided_load %arg10[%c0_52, %c0_53] {strides = array<i32: 2, 1>} : memref<64x128xf32, #tpu.memory_space<vmem>>, vector<4x128xf32>
    %c0_54 = arith.constant 0 : index
    %c0_55 = arith.constant 0 : index
    %53 = vector.load %arg11[%c0_54, %c0_55] : memref<16x128xf32, #tpu.memory_space<vmem>>, vector<4x128xf32>
    tpu.vector_store %arg11[%c0_54, %c0_55], %52 {strides = array<i32>} : memref<16x128xf32, #tpu.memory_space<vmem>>, vector<4x128xf32>,
    %c16_56 = arith.constant 16 : index
    %c0_57 = arith.constant 0 : index
    %54 = tpu.strided_load %arg10[%c16_56, %c0_57] {strides = array<i32: 2, 1>} : memref<64x128xf32, #tpu.memory_space<vmem>>, vector<4x128xf32>
    %c4 = arith.constant 4 : index
    %c0_58 = arith.constant 0 : index
    %55 = vector.load %arg11[%c4, %c0_58] : memref<16x128xf32, #tpu.memory_space<vmem>>, vector<4x128xf32>
    tpu.vector_store %arg11[%c4, %c0_58], %54 {strides = array<i32>} : memref<16x128xf32, #tpu.memory_space<vmem>>, vector<4x128xf32>,
    %c32_59 = arith.constant 32 : index
    %c0_60 = arith.constant 0 : index
    %56 = tpu.strided_load %arg10[%c32_59, %c0_60] {strides = array<i32: 2, 1>} : memref<64x128xf32, #tpu.memory_space<vmem>>, vector<4x128xf32>
    %c8_61 = arith.constant 8 : index
    %c0_62 = arith.constant 0 : index
    %57 = vector.load %arg11[%c8_61, %c0_62] : memref<16x128xf32, #tpu.memory_space<vmem>>, vector<4x128xf32>
    tpu.vector_store %arg11[%c8_61, %c0_62], %56 {strides = array<i32>} : memref<16x128xf32, #tpu.memory_space<vmem>>, vector<4x128xf32>,
    %c48_63 = arith.constant 48 : index
    %c0_64 = arith.constant 0 : index
    %58 = tpu.strided_load %arg10[%c48_63, %c0_64] {strides = array<i32: 2, 1>} : memref<64x128xf32, #tpu.memory_space<vmem>>, vector<4x128xf32>
    %c12 = arith.constant 12 : index
    %c0_65 = arith.constant 0 : index
    %59 = vector.load %arg11[%c12, %c0_65] : memref<16x128xf32, #tpu.memory_space<vmem>>, vector<4x128xf32>
    tpu.vector_store %arg11[%c12, %c0_65], %58 {strides = array<i32>} : memref<16x128xf32, #tpu.memory_space<vmem>>, vector<4x128xf32>,
    %c0_66 = arith.constant 0 : index
    %c0_67 = arith.constant 0 : index
    %60 = vector.load %arg11[%c0_66, %c0_67] : memref<16x128xf32, #tpu.memory_space<vmem>>, vector<16x128xf32>
    %61 = arith.truncf %60 : vector<16x128xf32> to vector<16x128xbf16>
    %c2 = arith.constant 2 : index
    %c0_68 = arith.constant 0 : index
    %c0_69 = arith.constant 0 : index
    %62 = vector.load %arg3[%c2, %c0_68, %c0_69] : memref<4x128x128xbf16, #tpu.memory_space<vmem>>, vector<1x128x128xbf16>
    %63 = vector.shape_cast %62 : vector<1x128x128xbf16> to vector<128x128xbf16>
    %cst_70 = arith.constant dense<0.000000e+00> : vector<16x128xf32>
    %64 = tpu.matmul %61, %63, %cst_70 {dimension_numbers = #tpu.dot_dimension_numbers<[1], [0], [0], [1], [0, 0, 1, 1], [], []>} : vector<16x128xbf16>, vector<128x128xbf16>, vector<16x128xf32> -> vector<16x128xf32>
    %c2_71 = arith.constant 2 : index
    %c0_72 = arith.constant 0 : index
    %65 = vector.load %arg4[%c2_71, %c0_72] : memref<4x128xf32, #tpu.memory_space<vmem>>, vector<1x128xf32>
    %66 = vector.broadcast %65 : vector<1x128xf32> to vector<16x128xf32>
    %67 = arith.addf %64, %66 : vector<16x128xf32>
    %cst_73 = arith.constant 0.000000e+00 : f32
    %68 = vector.broadcast %cst_73 : f32 to vector<16x128xf32>
    %69 = arith.maximumf %67, %68 : vector<16x128xf32>
    %70 = arith.truncf %69 : vector<16x128xf32> to vector<16x128xbf16>
    %c0_74 = arith.constant 0 : index
    %c0_75 = arith.constant 0 : index
    %c0_76 = arith.constant 0 : index
    %71 = vector.load %arg7[%c0_74, %c0_75, %c0_76] : memref<1x16x128xbf16, #tpu.memory_space<vmem>>, vector<1x16x128xbf16>
    %72 = vector.shape_cast %71 : vector<1x16x128xbf16> to vector<16x128xbf16>
    %73 = vector.shape_cast %70 : vector<16x128xbf16> to vector<1x16x128xbf16>
    tpu.vector_store %arg7[%c0_74, %c0_75, %c0_76], %73 {strides = array<i32>} : memref<1x16x128xbf16, #tpu.memory_space<vmem>>, vector<1x16x128xbf16>,
    %c0_77 = arith.constant 0 : index
    %c0_78 = arith.constant 0 : index
    %74 = vector.load %arg11[%c0_77, %c0_78] : memref<16x128xf32, #tpu.memory_space<vmem>>, vector<16x128xf32>
    tpu.vector_store %arg11[%c0_77, %c0_78], %69 {strides = array<i32>} : memref<16x128xf32, #tpu.memory_space<vmem>>, vector<16x128xf32>,
    %c0_79 = arith.constant 0 : index
    %c0_80 = arith.constant 0 : index
    %75 = tpu.strided_load %arg11[%c0_79, %c0_80] {strides = array<i32: 2, 1>} : memref<16x128xf32, #tpu.memory_space<vmem>>, vector<2x128xf32>
    %c0_81 = arith.constant 0 : index
    %c0_82 = arith.constant 0 : index
    %76 = vector.load %arg12[%c0_81, %c0_82] : memref<4x128xf32, #tpu.memory_space<vmem>>, vector<2x128xf32>
    tpu.vector_store %arg12[%c0_81, %c0_82], %75 {strides = array<i32>} : memref<4x128xf32, #tpu.memory_space<vmem>>, vector<2x128xf32>,
    %c8_83 = arith.constant 8 : index
    %c0_84 = arith.constant 0 : index
    %77 = tpu.strided_load %arg11[%c8_83, %c0_84] {strides = array<i32: 2, 1>} : memref<16x128xf32, #tpu.memory_space<vmem>>, vector<2x128xf32>
    %c2_85 = arith.constant 2 : index
    %c0_86 = arith.constant 0 : index
    %78 = vector.load %arg12[%c2_85, %c0_86] : memref<4x128xf32, #tpu.memory_space<vmem>>, vector<2x128xf32>
    tpu.vector_store %arg12[%c2_85, %c0_86], %77 {strides = array<i32>} : memref<4x128xf32, #tpu.memory_space<vmem>>, vector<2x128xf32>,
    %c0_87 = arith.constant 0 : index
    %c0_88 = arith.constant 0 : index
    %79 = vector.load %arg12[%c0_87, %c0_88] : memref<4x128xf32, #tpu.memory_space<vmem>>, vector<4x128xf32>
    %80 = arith.truncf %79 : vector<4x128xf32> to vector<4x128xbf16>
    %c3 = arith.constant 3 : index
    %c0_89 = arith.constant 0 : index
    %c0_90 = arith.constant 0 : index
    %81 = vector.load %arg3[%c3, %c0_89, %c0_90] : memref<4x128x128xbf16, #tpu.memory_space<vmem>>, vector<1x128x128xbf16>
    %82 = vector.shape_cast %81 : vector<1x128x128xbf16> to vector<128x128xbf16>
    %cst_91 = arith.constant dense<0.000000e+00> : vector<4x128xf32>
    %83 = tpu.matmul %80, %82, %cst_91 {dimension_numbers = #tpu.dot_dimension_numbers<[1], [0], [0], [1], [0, 0, 1, 1], [], []>} : vector<4x128xbf16>, vector<128x128xbf16>, vector<4x128xf32> -> vector<4x128xf32>
    %c3_92 = arith.constant 3 : index
    %c0_93 = arith.constant 0 : index
    %84 = vector.load %arg4[%c3_92, %c0_93] : memref<4x128xf32, #tpu.memory_space<vmem>>, vector<1x128xf32>
    %85 = vector.broadcast %84 : vector<1x128xf32> to vector<4x128xf32>
    %86 = arith.addf %83, %85 : vector<4x128xf32>
    %cst_94 = arith.constant 0.000000e+00 : f32
    %87 = vector.broadcast %cst_94 : f32 to vector<4x128xf32>
    %88 = arith.maximumf %86, %87 : vector<4x128xf32>
    %89 = arith.truncf %88 : vector<4x128xf32> to vector<4x128xbf16>
    %c0_95 = arith.constant 0 : index
    %c0_96 = arith.constant 0 : index
    %c0_97 = arith.constant 0 : index
    %90 = vector.load %arg8[%c0_95, %c0_96, %c0_97] : memref<1x4x128xbf16, #tpu.memory_space<vmem>>, vector<1x4x128xbf16>
    %91 = vector.shape_cast %90 : vector<1x4x128xbf16> to vector<4x128xbf16>
    %92 = vector.shape_cast %89 : vector<4x128xbf16> to vector<1x4x128xbf16>
    tpu.vector_store %arg8[%c0_95, %c0_96, %c0_97], %92 {strides = array<i32>} : memref<1x4x128xbf16, #tpu.memory_space<vmem>>, vector<1x4x128xbf16>,
    return
  }
  func.func @transform_0(%arg0: i32, %arg1: i32) -> (i32, i32, i32) {
    %c0_i32 = arith.constant 0 : i32
    %c0_i32_0 = arith.constant 0 : i32
    return %arg0, %arg1, %c0_i32 : i32, i32, i32
  }
  func.func @transform_1(%arg0: i32, %arg1: i32) -> (i32, i32, i32) {
    %c0_i32 = arith.constant 0 : i32
    %c0_i32_0 = arith.constant 0 : i32
    %c0_i32_1 = arith.constant 0 : i32
    %c0_i32_2 = arith.constant 0 : i32
    return %c0_i32, %c0_i32_0, %c0_i32_1 : i32, i32, i32
  }
  func.func @transform_2(%arg0: i32, %arg1: i32) -> (i32, i32) {
    %c0_i32 = arith.constant 0 : i32
    %c0_i32_0 = arith.constant 0 : i32
    %c0_i32_1 = arith.constant 0 : i32
    return %c0_i32, %c0_i32_0 : i32, i32
  }
  func.func @transform_3(%arg0: i32, %arg1: i32) -> (i32, i32, i32) {
    %c0_i32 = arith.constant 0 : i32
    %c0_i32_0 = arith.constant 0 : i32
    return %arg0, %arg1, %c0_i32 : i32, i32, i32
  }
  func.func @transform_4(%arg0: i32, %arg1: i32) -> (i32, i32, i32) {
    %c0_i32 = arith.constant 0 : i32
    %c0_i32_0 = arith.constant 0 : i32
    return %arg0, %arg1, %c0_i32 : i32, i32, i32
  }
  func.func @transform_5(%arg0: i32, %arg1: i32) -> (i32, i32, i32) {
    %c0_i32 = arith.constant 0 : i32
    %c0_i32_0 = arith.constant 0 : i32
    return %arg0, %arg1, %c0_i32 : i32, i32, i32
  }
  func.func @transform_6(%arg0: i32, %arg1: i32) -> (i32, i32, i32) {
    %c0_i32 = arith.constant 0 : i32
    %c0_i32_0 = arith.constant 0 : i32
    return %arg0, %arg1, %c0_i32 : i32, i32, i32
  }
}

</mosaic_0001>

<llo_original>
// kernel: tpu_custom_call.1
$region0: #{tpu_custom_call.1}
  #allocation0 [shape = 'u32[]', space=smem, size = 0x4, offset = 0x4, fixed_abs, tag = 'smem constant byte address 0x4 - core index']
  #allocation1 [shape = 'u32[144,128]{1,0:T(1,128)}', space=vmem, size = 0x12000, scoped, tag = 'internal scratch']
  #allocation2 [shape = 'f32[256,128]{1,0:T(8,128)}', space=vmem, size = 0x20000, scoped, tag = 'scratch operand']
  #allocation3 [shape = 'f32[64,128]{1,0:T(8,128)}', space=vmem, size = 0x8000, scoped, tag = 'scratch operand']
  #allocation4 [shape = 'f32[16,128]{1,0:T(8,128)}', space=vmem, size = 0x2000, scoped, tag = 'scratch operand']
  #allocation5 [shape = 'f32[4,128]{1,0:T(4,128)}', space=vmem, size = 0x800, scoped, tag = 'scratch operand']
  %s0 = inlined_call_operand.vmem [shape: bf16[2,256,4], index: 0, kind: input, shape index: {}]
  %s1 = inlined_call_operand.vmem [shape: bf16[4,128,128], index: 1, kind: input, shape index: {}]
  %s2 = inlined_call_operand.vmem [shape: f32[4,128], index: 2, kind: input, shape index: {}]
  %s3 = inlined_call_operand.hbm [shape: bf16[2,256,128], index: 3, kind: output, shape index: {0}]
  %s4 = inlined_call_operand.hbm [shape: bf16[2,64,128], index: 4, kind: output, shape index: {1}]
  %s5 = inlined_call_operand.hbm [shape: bf16[2,16,128], index: 5, kind: output, shape index: {2}]
  %s6 = inlined_call_operand.hbm [shape: bf16[2,4,128], index: 6, kind: output, shape index: {3}]
  %7 = xla_tuple %s3, %s4, %s5, %s6
  %s8 = sld [smem:[#allocation0]]
  $region69: #{tpu_custom_call.1} parent=0
    _
  %s10 = ssub.s32 1, %s8
  %s11 = scalar_select 0, %s10, %s8
  $region1: #{tpu_custom_call.1} parent=0
    #allocation6 [shape = 'u8[131072]{0}', space=vmem, size = 0x20000, scoped, tag = 'output window, operand 0']
    #allocation7 [shape = 's32[2]{0}', space=sflag, size = 0x8, scoped, tag = 'scoped memory for tpu_custom_call.1']
    #allocation8 [shape = 'u8[32768]{0}', space=vmem, size = 0x8000, scoped, tag = 'output window, operand 1']
    #allocation9 [shape = 's32[2]{0}', space=sflag, size = 0x8, scoped, tag = 'scoped memory for tpu_custom_call.1']
    #allocation10 [shape = 'u8[8192]{0}', space=vmem, size = 0x2000, scoped, tag = 'output window, operand 2']
    #allocation11 [shape = 'u8[2048]{0}', space=vmem, size = 0x800, scoped, tag = 'output window, operand 3']
    #allocation12 [shape = 's32[2]{0}', space=sflag, size = 0x8, scoped, tag = 'scoped memory for tpu_custom_call.1']
    %12 = vsyncpa [#allocation7], 0
    %s13 = scalar_lea.sflag [#allocation7], 1
    %14 = vsyncpa %s13, 0
    %15 = vsyncpa [#allocation9], 0
    %s16 = scalar_lea.sflag [#allocation9], 1
    %17 = vsyncpa %s16, 0
    %18 = vsyncpa [#allocation12], 0
    %s19 = scalar_lea.sflag [#allocation12], 1
    %20 = vsyncpa %s19, 0
    loop: start=0, step=1, limit=4
    $region2: #{tpu_custom_call.1} parent=1 // loop_pre_header
      _
    $region3: #{tpu_custom_call.1} parent=1 // loop_header
      %s22 = sphi 0, %s26
      %p23 = scmp.ge.s32.totalorder %s22, 4
      %s29 = sphi 0, %s41
      %s30 = sphi 0, %s37
      %s31 = sphi 0, %s29
      %s32 = sphi 0, %s30
      %s33 = sphi 0, %s31
      %s34 = sphi 0, %s32
      %s46 = sphi 0, %s48
      %s49 = sphi 0, %s46
      %s50 = sphi 0, %s49
      %s66 = sphi 0, %s50
      %s70 = sphi 0, %s70
      %s72 = sphi 0, %s70
      %s73 = sphi 0, %s72
      %s87 = sphi 0, %s73
      %s91 = sphi 0, %s91
      %s93 = sphi 0, %s91
      %s94 = sphi 0, %s93
      %s108 = sphi 0, %s94
      %s116 = sphi 0, %s118
      %s119 = sphi 0, %s116
      %s120 = sphi 0, %s119
      %s136 = sphi 0, %s120
      %s144 = sphi 0, %s146
      %s147 = sphi 0, %s144
      %s148 = sphi 0, %s147
      %s164 = sphi 0, %s148
      %s172 = sphi 0, %s174
      %s175 = sphi 0, %s172
      %s176 = sphi 0, %s175
      %s192 = sphi 0, %s176
      %s200 = sphi 0, %s202
      %s203 = sphi 0, %s200
      %s204 = sphi 0, %s203
      %s220 = sphi 0, %s204
    $region4: #{tpu_custom_call.1} parent=1 // loop_header_branch
      %25 = sbr.rel (%p23) target = $region8
    $region5: #{tpu_custom_call.1} parent=1 // loop_body
      %s27 = ssub.s32 %s22, 1
      %s28 = ssub.s32 %s22, 2
      %s35 = sadd.s32 1, %s30
      %p36 = scmp.ge.s32.totalorder %s35, 1
      %s37 = scalar_select %p36, 0, %s35
      %s38 = sadd.s32 1, %s29
      %s39 = scalar_select %p36, %s38, %s29
      %p40 = scmp.ge.s32.totalorder %s39, 2
      %s41 = scalar_select %p40, 0, %s39
      %s42 = ssub.s32 %s29, %s41
      %s43 = ssub.s32 %s30, %s37
      %s44 = sor.u32 %s42, %s43
      %p45 = scmp.eq.s32.totalorder %s44, 0
      %s47 = sadd.s32 %s46, 1
      %s48 = scalar_select %p45, %s46, %s47
      %p51 = pneg %p45
      %p52 = scmp.eq.s32.totalorder %s22, 1
      %p53 = por %p51, %p52
      %p54 = scmp.ne.s32.totalorder %s46, %s49
      %p55 = scmp.eq.s32.totalorder %s22, 0
      %p56 = por %p54, %p55
      %p57 = scmp.ne.s32.totalorder %s46, %s49
      %p58 = scmp.eq.s32.totalorder %s27, 1
      %p59 = por %p57, %p58
      %p60 = scmp.ne.s32.totalorder %s49, %s50
      %p61 = scmp.eq.s32.totalorder %s27, 0
      %p62 = por %p60, %p61
      %p63 = scmp.ne.s32.totalorder %s49, %s50
      %p64 = scmp.eq.s32.totalorder %s28, 1
      %p65 = por %p63, %p64
      %p67 = scmp.ne.s32.totalorder %s50, %s66
      %p68 = scmp.eq.s32.totalorder %s28, 0
      %p69 = por %p67, %p68
      %s71 = sadd.s32 %s70, 1
      %p74 = scmp.eq.s32.totalorder %s22, 1
      %p75 = scmp.ne.s32.totalorder %s70, %s72
      %p76 = scmp.eq.s32.totalorder %s22, 0
      %p77 = por %p75, %p76
      %p78 = scmp.ne.s32.totalorder %s70, %s72
      %p79 = scmp.eq.s32.totalorder %s27, 1
      %p80 = por %p78, %p79
      %p81 = scmp.ne.s32.totalorder %s72, %s73
      %p82 = scmp.eq.s32.totalorder %s27, 0
      %p83 = por %p81, %p82
      %p84 = scmp.ne.s32.totalorder %s72, %s73
      %p85 = scmp.eq.s32.totalorder %s28, 1
      %p86 = por %p84, %p85
      %p88 = scmp.ne.s32.totalorder %s73, %s87
      %p89 = scmp.eq.s32.totalorder %s28, 0
      %p90 = por %p88, %p89
      %s92 = sadd.s32 %s91, 1
      %p95 = scmp.eq.s32.totalorder %s22, 1
      %p96 = scmp.ne.s32.totalorder %s91, %s93
      %p97 = scmp.eq.s32.totalorder %s22, 0
      %p98 = por %p96, %p97
      %p99 = scmp.ne.s32.totalorder %s91, %s93
      %p100 = scmp.eq.s32.totalorder %s27, 1
      %p101 = por %p99, %p100
      %p102 = scmp.ne.s32.totalorder %s93, %s94
      %p103 = scmp.eq.s32.totalorder %s27, 0
      %p104 = por %p102, %p103
      %p105 = scmp.ne.s32.totalorder %s93, %s94
      %p106 = scmp.eq.s32.totalorder %s28, 1
      %p107 = por %p105, %p106
      %p109 = scmp.ne.s32.totalorder %s94, %s108
      %p110 = scmp.eq.s32.totalorder %s28, 0
      %p111 = por %p109, %p110
      %s112 = ssub.s32 %s29, %s41
      %s113 = ssub.s32 %s30, %s37
      %s114 = sor.u32 %s112, %s113
      %p115 = scmp.eq.s32.totalorder %s114, 0
      %s117 = sadd.s32 %s116, 1
      %s118 = scalar_select %p115, %s116, %s117
      %p121 = pneg %p115
      %p122 = scmp.eq.s32.totalorder %s22, 1
      %p123 = por %p121, %p122
      %p124 = scmp.ne.s32.totalorder %s116, %s119
      %p125 = scmp.eq.s32.totalorder %s22, 0
      %p126 = por %p124, %p125
      %p127 = scmp.ne.s32.totalorder %s116, %s119
      %p128 = scmp.eq.s32.totalorder %s27, 1
      %p129 = por %p127, %p128
      %p130 = scmp.ne.s32.totalorder %s119, %s120
      %p131 = scmp.eq.s32.totalorder %s27, 0
      %p132 = por %p130, %p131
      %p133 = scmp.ne.s32.totalorder %s119, %s120
      %p134 = scmp.eq.s32.totalorder %s28, 1
      %p135 = por %p133, %p134
      %p137 = scmp.ne.s32.totalorder %s120, %s136
      %p138 = scmp.eq.s32.totalorder %s28, 0
      %p139 = por %p137, %p138
      %s140 = ssub.s32 %s29, %s41
      %s141 = ssub.s32 %s30, %s37
      %s142 = sor.u32 %s140, %s141
      %p143 = scmp.eq.s32.totalorder %s142, 0
      %s145 = sadd.s32 %s144, 1
      %s146 = scalar_select %p143, %s144, %s145
      %p149 = pneg %p143
      %p150 = scmp.eq.s32.totalorder %s22, 1
      %p151 = por %p149, %p150
      %p152 = scmp.ne.s32.totalorder %s144, %s147
      %p153 = scmp.eq.s32.totalorder %s22, 0
      %p154 = por %p152, %p153
      %p155 = scmp.ne.s32.totalorder %s144, %s147
      %p156 = scmp.eq.s32.totalorder %s27, 1
      %p157 = por %p155, %p156
      %p158 = scmp.ne.s32.totalorder %s147, %s148
      %p159 = scmp.eq.s32.totalorder %s27, 0
      %p160 = por %p158, %p159
      %p161 = scmp.ne.s32.totalorder %s147, %s148
      %p162 = scmp.eq.s32.totalorder %s28, 1
      %p163 = por %p161, %p162
      %p165 = scmp.ne.s32.totalorder %s148, %s164
      %p166 = scmp.eq.s32.totalorder %s28, 0
      %p167 = por %p165, %p166
      %s168 = ssub.s32 %s29, %s41
      %s169 = ssub.s32 %s30, %s37
      %s170 = sor.u32 %s168, %s169
      %p171 = scmp.eq.s32.totalorder %s170, 0
      %s173 = sadd.s32 %s172, 1
      %s174 = scalar_select %p171, %s172, %s173
      %p177 = pneg %p171
      %p178 = scmp.eq.s32.totalorder %s22, 1
      %p179 = por %p177, %p178
      %p180 = scmp.ne.s32.totalorder %s172, %s175
      %p181 = scmp.eq.s32.totalorder %s22, 0
      %p182 = por %p180, %p181
      %p183 = scmp.ne.s32.totalorder %s172, %s175
      %p184 = scmp.eq.s32.totalorder %s27, 1
      %p185 = por %p183, %p184
      %p186 = scmp.ne.s32.totalorder %s175, %s176
      %p187 = scmp.eq.s32.totalorder %s27, 0
      %p188 = por %p186, %p187
      %p189 = scmp.ne.s32.totalorder %s175, %s176
      %p190 = scmp.eq.s32.totalorder %s28, 1
      %p191 = por %p189, %p190
      %p193 = scmp.ne.s32.totalorder %s176, %s192
      %p194 = scmp.eq.s32.totalorder %s28, 0
      %p195 = por %p193, %p194
      %s196 = ssub.s32 %s29, %s41
      %s197 = ssub.s32 %s30, %s37
      %s198 = sor.u32 %s196, %s197
      %p199 = scmp.eq.s32.totalorder %s198, 0
      %s201 = sadd.s32 %s200, 1
      %s202 = scalar_select %p199, %s200, %s201
      %p205 = pneg %p199
      %p206 = scmp.eq.s32.totalorder %s22, 1
      %p207 = por %p205, %p206
      %p208 = scmp.ne.s32.totalorder %s200, %s203
      %p209 = scmp.eq.s32.totalorder %s22, 0
      %p210 = por %p208, %p209
      %p211 = scmp.ne.s32.totalorder %s200, %s203
      %p212 = scmp.eq.s32.totalorder %s27, 1
      %p213 = por %p211, %p212
      %p214 = scmp.ne.s32.totalorder %s203, %s204
      %p215 = scmp.eq.s32.totalorder %s27, 0
      %p216 = por %p214, %p215
      %p217 = scmp.ne.s32.totalorder %s203, %s204
      %p218 = scmp.eq.s32.totalorder %s28, 1
      %p219 = por %p217, %p218
      %p221 = scmp.ne.s32.totalorder %s204, %s220
      %p222 = scmp.eq.s32.totalorder %s28, 0
      %p223 = por %p221, %p222
      %p224 = scmp.le.s32.totalorder 1, %s22
      %p225 = scmp.lt.s32.totalorder %s22, 3
      %p226 = pnand %p224, %p225
      %p227 = pneg %p226
      // Predicated region
      $region9: #{tpu_custom_call.1} parent=5 // pred_check
        _
      $region10: #{tpu_custom_call.1} parent=5 // pred_check_branch
        %229 = sbr.rel (%p226) target = $region12
      $region11: #{tpu_custom_call.1} parent=5 // pred_region
        %s230 = ssub.s32 %s22, 1
        // Predicated region
        $region13: #{tpu_custom_call.1} parent=11 // pred_check
          %p231 = pneg %p83
        $region14: #{tpu_custom_call.1} parent=11 // pred_check_branch
          %233 = sbr.rel (%p231) target = $region16
        $region15: #{tpu_custom_call.1} parent=11 // pred_region
          _
        $region16: #{tpu_custom_call.1} parent=11 // pred_fallthru
          _
        // Predicated region
        $region17: #{tpu_custom_call.1} parent=11 // pred_check
          %p234 = pneg %p104
        $region18: #{tpu_custom_call.1} parent=11 // pred_check_branch
          %236 = sbr.rel (%p234) target = $region20
        $region19: #{tpu_custom_call.1} parent=11 // pred_region
          _
        $region20: #{tpu_custom_call.1} parent=11 // pred_fallthru
          _
      $region12: #{tpu_custom_call.1} parent=5 // pred_fallthru
        _
      %p237 = scmp.lt.s32.totalorder %s22, 2
      // Predicated region
      $region21: #{tpu_custom_call.1} parent=5 // pred_check
        %p238 = pneg %p237
      $region22: #{tpu_custom_call.1} parent=5 // pred_check_branch
        %240 = sbr.rel (%p238) target = $region24
      $region23: #{tpu_custom_call.1} parent=5 // pred_region
        // Predicated region
        $region25: #{tpu_custom_call.1} parent=23 // pred_check
          %p241 = pneg %p56
        $region26: #{tpu_custom_call.1} parent=23 // pred_check_branch
          %243 = sbr.rel (%p241) target = $region28
        $region27: #{tpu_custom_call.1} parent=23 // pred_region
          %s244 = smul.u32 32, %s30
          %p245 = scmp.lt.s32.totalorder %s29, 1
          %s246 = scalar_select %p245, %s29, 1
          %p247 = scmp.lt.s32.totalorder %s244, 31
          %s248 = scalar_select %p247, %s244, 31
          %s249 = smul.addr %s246, 32
          %s250 = sadd.s32 %s248, %s249
          %s251 = smul.addr %s250, 4
          %s252 = scalar_lea.vmem %s0, %s251
          %s253 = smul.u32 32, %s30
        $region28: #{tpu_custom_call.1} parent=23 // pred_fallthru
          _
      $region24: #{tpu_custom_call.1} parent=5 // pred_fallthru
        _
      %p254 = scmp.le.s32.totalorder 1, %s22
      %p255 = scmp.lt.s32.totalorder %s22, 3
      %p256 = pnand %p254, %p255
      %p257 = pneg %p256
      // Predicated region
      $region29: #{tpu_custom_call.1} parent=5 // pred_check
        _
      $region30: #{tpu_custom_call.1} parent=5 // pred_check_branch
        %259 = sbr.rel (%p256) target = $region32
      $region31: #{tpu_custom_call.1} parent=5 // pred_region
        %s260 = ssub.s32 %s22, 1
        %s261 = smul.u32 32, %s32
        %p262 = scmp.lt.s32.totalorder %s31, 1
        %s263 = scalar_select %p262, %s31, 1
        %p264 = scmp.lt.s32.totalorder %s261, 31
        %s265 = scalar_select %p264, %s261, 31
        %s266 = smul.addr %s263, 32
        %s267 = sadd.s32 %s265, %s266
        %s268 = smul.addr %s267, 4
        %s269 = scalar_lea.vmem %s0, %s268
        %p270 = pneg %p62
        %p271 = pneg %p59
        %p272 = pneg %p83
        %p273 = pneg %p80
        %p274 = pneg %p104
        %p275 = pneg %p101
        %p276 = pneg %p132
        %p277 = pneg %p129
        %s278 = sand.u32 %s119, 1
        %s279 = scalar_lea.sflag [#allocation7], %s278
        %s280 = sand.u32 %s119, 1
        %s281 = smul.addr %s280, 128
        %s282 = scalar_lea.vmem [#allocation6], %s281
        %p283 = pneg %p160
        %p284 = pneg %p157
        %s285 = sand.u32 %s27, 1
        %s286 = scalar_lea.sflag [#allocation9], %s285
        %s287 = sand.u32 %s147, 1
        %s288 = smul.addr %s287, 32
        %s289 = scalar_lea.vmem [#allocation8], %s288
        %p290 = pneg %p188
        %p291 = pneg %p185
        %s292 = sand.u32 %s27, 1
        %s293 = scalar_lea.sflag [#allocation9], %s292
        %s294 = sand.u32 %s175, 1
        %s295 = smul.addr %s294, 8
        %s296 = scalar_lea.vmem [#allocation10], %s295
        %p297 = pneg %p216
        %p298 = pneg %p213
        %s299 = sand.u32 %s203, 1
        %s300 = scalar_lea.sflag [#allocation12], %s299
        %s301 = sand.u32 %s203, 1
        %s302 = smul.addr %s301, 2
        %s303 = scalar_lea.vmem [#allocation11], %s302
        %s304 = smul.u32 32, %s32
        %p305 = scmp.lt.s32.totalorder %s31, 1
        %s306 = scalar_select %p305, %s31, 1
        %p307 = scmp.lt.s32.totalorder %s304, 31
        %s308 = scalar_select %p307, %s304, 31
        %s309 = smul.addr %s306, 32
        %s310 = sadd.s32 %s308, %s309
        %s311 = smul.addr %s310, 4
        %s312 = scalar_lea.vmem %s0, %s311
        %s313 = smul.u32 32, %s32
        %s314 = smul.u32 32, %s32
        %s315 = smul.u32 8, %s32
        %s316 = smul.u32 2, %s32
        %318 = vst [vmem:[#allocation2] sm:$0xff] 0.0
        %319 = vst [vmem:[#allocation2 + $0x8] sm:$0xff] 0.0
        %320 = vst [vmem:[#allocation2 + $0x10] sm:$0xff] 0.0
        %321 = vst [vmem:[#allocation2 + $0x18] sm:$0xff] 0.0
        %322 = vst [vmem:[#allocation2 + $0x20] sm:$0xff] 0.0
        %323 = vst [vmem:[#allocation2 + $0x28] sm:$0xff] 0.0
        %324 = vst [vmem:[#allocation2 + $0x30] sm:$0xff] 0.0
        %325 = vst [vmem:[#allocation2 + $0x38] sm:$0xff] 0.0
        %326 = vst [vmem:[#allocation2 + $0x40] sm:$0xff] 0.0
        %327 = vst [vmem:[#allocation2 + $0x48] sm:$0xff] 0.0
        %328 = vst [vmem:[#allocation2 + $0x50] sm:$0xff] 0.0
        %329 = vst [vmem:[#allocation2 + $0x58] sm:$0xff] 0.0
        %330 = vst [vmem:[#allocation2 + $0x60] sm:$0xff] 0.0
        %331 = vst [vmem:[#allocation2 + $0x68] sm:$0xff] 0.0
        %332 = vst [vmem:[#allocation2 + $0x70] sm:$0xff] 0.0
        %333 = vst [vmem:[#allocation2 + $0x78] sm:$0xff] 0.0
        %334 = vst [vmem:[#allocation2 + $0x80] sm:$0xff] 0.0
        %335 = vst [vmem:[#allocation2 + $0x88] sm:$0xff] 0.0
        %336 = vst [vmem:[#allocation2 + $0x90] sm:$0xff] 0.0
        %337 = vst [vmem:[#allocation2 + $0x98] sm:$0xff] 0.0
        %338 = vst [vmem:[#allocation2 + $0xa0] sm:$0xff] 0.0
        %339 = vst [vmem:[#allocation2 + $0xa8] sm:$0xff] 0.0
        %340 = vst [vmem:[#allocation2 + $0xb0] sm:$0xff] 0.0
        %341 = vst [vmem:[#allocation2 + $0xb8] sm:$0xff] 0.0
        %342 = vst [vmem:[#allocation2 + $0xc0] sm:$0xff] 0.0
        %343 = vst [vmem:[#allocation2 + $0xc8] sm:$0xff] 0.0
        %344 = vst [vmem:[#allocation2 + $0xd0] sm:$0xff] 0.0
        %345 = vst [vmem:[#allocation2 + $0xd8] sm:$0xff] 0.0
        %346 = vst [vmem:[#allocation2 + $0xe0] sm:$0xff] 0.0
        %347 = vst [vmem:[#allocation2 + $0xe8] sm:$0xff] 0.0
        %348 = vst [vmem:[#allocation2 + $0xf0] sm:$0xff] 0.0
        %349 = vst [vmem:[#allocation2 + $0xf8] sm:$0xff] 0.0
        %v350 = vld [vmem:[%s312] sm:$0xf]
        %v351 = vld [vmem:[%s312 + $0x4] sm:$0xf]
        %v352 = vld [vmem:[%s312 + $0x8] sm:$0xf]
        %v353 = vld [vmem:[%s312 + $0xc] sm:$0xf]
        %v354 = vld [vmem:[%s312 + $0x10] sm:$0xf]
        %v355 = vld [vmem:[%s312 + $0x14] sm:$0xf]
        %v356 = vld [vmem:[%s312 + $0x18] sm:$0xf]
        %v357 = vld [vmem:[%s312 + $0x1c] sm:$0xf]
        %v358 = vld [vmem:[%s312 + $0x20] sm:$0xf]
        %v359 = vld [vmem:[%s312 + $0x24] sm:$0xf]
        %v360 = vld [vmem:[%s312 + $0x28] sm:$0xf]
        %v361 = vld [vmem:[%s312 + $0x2c] sm:$0xf]
        %v362 = vld [vmem:[%s312 + $0x30] sm:$0xf]
        %v363 = vld [vmem:[%s312 + $0x34] sm:$0xf]
        %v364 = vld [vmem:[%s312 + $0x38] sm:$0xf]
        %v365 = vld [vmem:[%s312 + $0x3c] sm:$0xf]
        %v366 = vld [vmem:[%s312 + $0x40] sm:$0xf]
        %v367 = vld [vmem:[%s312 + $0x44] sm:$0xf]
        %v368 = vld [vmem:[%s312 + $0x48] sm:$0xf]
        %v369 = vld [vmem:[%s312 + $0x4c] sm:$0xf]
        %v370 = vld [vmem:[%s312 + $0x50] sm:$0xf]
        %v371 = vld [vmem:[%s312 + $0x54] sm:$0xf]
        %v372 = vld [vmem:[%s312 + $0x58] sm:$0xf]
        %v373 = vld [vmem:[%s312 + $0x5c] sm:$0xf]
        %v374 = vld [vmem:[%s312 + $0x60] sm:$0xf]
        %v375 = vld [vmem:[%s312 + $0x64] sm:$0xf]
        %v376 = vld [vmem:[%s312 + $0x68] sm:$0xf]
        %v377 = vld [vmem:[%s312 + $0x6c] sm:$0xf]
        %v378 = vld [vmem:[%s312 + $0x70] sm:$0xf]
        %v379 = vld [vmem:[%s312 + $0x74] sm:$0xf]
        %v380 = vld [vmem:[%s312 + $0x78] sm:$0xf]
        %v381 = vld [vmem:[%s312 + $0x7c] sm:$0xf]
        %v382 = vunpack.c.l.bf16 %v350
        %v383 = vunpack.c.l.bf16 %v351
        %v384 = vunpack.c.l.bf16 %v352
        %v385 = vunpack.c.l.bf16 %v353
        %v386 = vunpack.c.l.bf16 %v354
        %v387 = vunpack.c.l.bf16 %v355
        %v388 = vunpack.c.l.bf16 %v356
        %v389 = vunpack.c.l.bf16 %v357
        %v390 = vunpack.c.l.bf16 %v358
        %v391 = vunpack.c.l.bf16 %v359
        %v392 = vunpack.c.l.bf16 %v360
        %v393 = vunpack.c.l.bf16 %v361
        %v394 = vunpack.c.l.bf16 %v362
        %v395 = vunpack.c.l.bf16 %v363
        %v396 = vunpack.c.l.bf16 %v364
        %v397 = vunpack.c.l.bf16 %v365
        %v398 = vunpack.c.l.bf16 %v366
        %v399 = vunpack.c.l.bf16 %v367
        %v400 = vunpack.c.l.bf16 %v368
        %v401 = vunpack.c.l.bf16 %v369
        %v402 = vunpack.c.l.bf16 %v370
        %v403 = vunpack.c.l.bf16 %v371
        %v404 = vunpack.c.l.bf16 %v372
        %v405 = vunpack.c.l.bf16 %v373
        %v406 = vunpack.c.l.bf16 %v374
        %v407 = vunpack.c.l.bf16 %v375
        %v408 = vunpack.c.l.bf16 %v376
        %v409 = vunpack.c.l.bf16 %v377
        %v410 = vunpack.c.l.bf16 %v378
        %v411 = vunpack.c.l.bf16 %v379
        %v412 = vunpack.c.l.bf16 %v380
        %v413 = vunpack.c.l.bf16 %v381
        %vm414 = vcmask 31744
        %415 = vst.msk [vmem:[#allocation2] sm:$0xff] %vm414, %v382
        %416 = vst.msk [vmem:[#allocation2 + $0x8] sm:$0xff] %vm414, %v383
        %417 = vst.msk [vmem:[#allocation2 + $0x10] sm:$0xff] %vm414, %v384
        %418 = vst.msk [vmem:[#allocation2 + $0x18] sm:$0xff] %vm414, %v385
        %419 = vst.msk [vmem:[#allocation2 + $0x20] sm:$0xff] %vm414, %v386
        %420 = vst.msk [vmem:[#allocation2 + $0x28] sm:$0xff] %vm414, %v387
        %421 = vst.msk [vmem:[#allocation2 + $0x30] sm:$0xff] %vm414, %v388
        %422 = vst.msk [vmem:[#allocation2 + $0x38] sm:$0xff] %vm414, %v389
        %423 = vst.msk [vmem:[#allocation2 + $0x40] sm:$0xff] %vm414, %v390
        %424 = vst.msk [vmem:[#allocation2 + $0x48] sm:$0xff] %vm414, %v391
        %425 = vst.msk [vmem:[#allocation2 + $0x50] sm:$0xff] %vm414, %v392
        %426 = vst.msk [vmem:[#allocation2 + $0x58] sm:$0xff] %vm414, %v393
        %427 = vst.msk [vmem:[#allocation2 + $0x60] sm:$0xff] %vm414, %v394
        %428 = vst.msk [vmem:[#allocation2 + $0x68] sm:$0xff] %vm414, %v395
        %429 = vst.msk [vmem:[#allocation2 + $0x70] sm:$0xff] %vm414, %v396
        %430 = vst.msk [vmem:[#allocation2 + $0x78] sm:$0xff] %vm414, %v397
        %431 = vst.msk [vmem:[#allocation2 + $0x80] sm:$0xff] %vm414, %v398
        %432 = vst.msk [vmem:[#allocation2 + $0x88] sm:$0xff] %vm414, %v399
        %433 = vst.msk [vmem:[#allocation2 + $0x90] sm:$0xff] %vm414, %v400
        %434 = vst.msk [vmem:[#allocation2 + $0x98] sm:$0xff] %vm414, %v401
        %435 = vst.msk [vmem:[#allocation2 + $0xa0] sm:$0xff] %vm414, %v402
        %436 = vst.msk [vmem:[#allocation2 + $0xa8] sm:$0xff] %vm414, %v403
        %437 = vst.msk [vmem:[#allocation2 + $0xb0] sm:$0xff] %vm414, %v404
        %438 = vst.msk [vmem:[#allocation2 + $0xb8] sm:$0xff] %vm414, %v405
        %439 = vst.msk [vmem:[#allocation2 + $0xc0] sm:$0xff] %vm414, %v406
        %440 = vst.msk [vmem:[#allocation2 + $0xc8] sm:$0xff] %vm414, %v407
        %441 = vst.msk [vmem:[#allocation2 + $0xd0] sm:$0xff] %vm414, %v408
        %442 = vst.msk [vmem:[#allocation2 + $0xd8] sm:$0xff] %vm414, %v409
        %443 = vst.msk [vmem:[#allocation2 + $0xe0] sm:$0xff] %vm414, %v410
        %444 = vst.msk [vmem:[#allocation2 + $0xe8] sm:$0xff] %vm414, %v411
        %445 = vst.msk [vmem:[#allocation2 + $0xf0] sm:$0xff] %vm414, %v412
        %446 = vst.msk [vmem:[#allocation2 + $0xf8] sm:$0xff] %vm414, %v413
        %v447 = vld [vmem:[#allocation2] sm:$0xff]
        %v448 = vld [vmem:[#allocation2 + $0x8] sm:$0xff]
        %v449 = vld [vmem:[#allocation2 + $0x10] sm:$0xff]
        %v450 = vld [vmem:[#allocation2 + $0x18] sm:$0xff]
        %v451 = vld [vmem:[#allocation2 + $0x20] sm:$0xff]
        %v452 = vld [vmem:[#allocation2 + $0x28] sm:$0xff]
        %v453 = vld [vmem:[#allocation2 + $0x30] sm:$0xff]
        %v454 = vld [vmem:[#allocation2 + $0x38] sm:$0xff]
        %v455 = vld [vmem:[#allocation2 + $0x40] sm:$0xff]
        %v456 = vld [vmem:[#allocation2 + $0x48] sm:$0xff]
        %v457 = vld [vmem:[#allocation2 + $0x50] sm:$0xff]
        %v458 = vld [vmem:[#allocation2 + $0x58] sm:$0xff]
        %v459 = vld [vmem:[#allocation2 + $0x60] sm:$0xff]
        %v460 = vld [vmem:[#allocation2 + $0x68] sm:$0xff]
        %v461 = vld [vmem:[#allocation2 + $0x70] sm:$0xff]
        %v462 = vld [vmem:[#allocation2 + $0x78] sm:$0xff]
        %v463 = vld [vmem:[#allocation2 + $0x80] sm:$0xff]
        %v464 = vld [vmem:[#allocation2 + $0x88] sm:$0xff]
        %v465 = vld [vmem:[#allocation2 + $0x90] sm:$0xff]
        %v466 = vld [vmem:[#allocation2 + $0x98] sm:$0xff]
        %v467 = vld [vmem:[#allocation2 + $0xa0] sm:$0xff]
        %v468 = vld [vmem:[#allocation2 + $0xa8] sm:$0xff]
        %v469 = vld [vmem:[#allocation2 + $0xb0] sm:$0xff]
        %v470 = vld [vmem:[#allocation2 + $0xb8] sm:$0xff]
        %v471 = vld [vmem:[#allocation2 + $0xc0] sm:$0xff]
        %v472 = vld [vmem:[#allocation2 + $0xc8] sm:$0xff]
        %v473 = vld [vmem:[#allocation2 + $0xd0] sm:$0xff]
        %v474 = vld [vmem:[#allocation2 + $0xd8] sm:$0xff]
        %v475 = vld [vmem:[#allocation2 + $0xe0] sm:$0xff]
        %v476 = vld [vmem:[#allocation2 + $0xe8] sm:$0xff]
        %v477 = vld [vmem:[#allocation2 + $0xf0] sm:$0xff]
        %v478 = vld [vmem:[#allocation2 + $0xf8] sm:$0xff]
        %v479 = vpack.c.bf16 %v448, %v447
        %v480 = vpack.c.bf16 %v450, %v449
        %v481 = vpack.c.bf16 %v452, %v451
        %v482 = vpack.c.bf16 %v454, %v453
        %v483 = vpack.c.bf16 %v456, %v455
        %v484 = vpack.c.bf16 %v458, %v457
        %v485 = vpack.c.bf16 %v460, %v459
        %v486 = vpack.c.bf16 %v462, %v461
        %v487 = vpack.c.bf16 %v464, %v463
        %v488 = vpack.c.bf16 %v466, %v465
        %v489 = vpack.c.bf16 %v468, %v467
        %v490 = vpack.c.bf16 %v470, %v469
        %v491 = vpack.c.bf16 %v472, %v471
        %v492 = vpack.c.bf16 %v474, %v473
        %v493 = vpack.c.bf16 %v476, %v475
        %v494 = vpack.c.bf16 %v478, %v477
        %v495 = vld [vmem:[%s1] sm:$0xf]
        %v496 = vld [vmem:[%s1 + $0x4] sm:$0xf]
        %v497 = vld [vmem:[%s1 + $0x8] sm:$0xf]
        %v498 = vld [vmem:[%s1 + $0xc] sm:$0xf]
        %v499 = vld [vmem:[%s1 + $0x10] sm:$0xf]
        %v500 = vld [vmem:[%s1 + $0x14] sm:$0xf]
        %v501 = vld [vmem:[%s1 + $0x18] sm:$0xf]
        %v502 = vld [vmem:[%s1 + $0x1c] sm:$0xf]
        %v503 = vld [vmem:[%s1 + $0x20] sm:$0xf]
        %v504 = vld [vmem:[%s1 + $0x24] sm:$0xf]
        %v505 = vld [vmem:[%s1 + $0x28] sm:$0xf]
        %v506 = vld [vmem:[%s1 + $0x2c] sm:$0xf]
        %v507 = vld [vmem:[%s1 + $0x30] sm:$0xf]
        %v508 = vld [vmem:[%s1 + $0x34] sm:$0xf]
        %v509 = vld [vmem:[%s1 + $0x38] sm:$0xf]
        %v510 = vld [vmem:[%s1 + $0x3c] sm:$0xf]
        %v511 = vld [vmem:[%s2] sm:$0x1]
        %v512 = vlaneseq
        %v513 = vshrl.u32 %v512, 7
        %v514 = vsub.s32 0, %v513
        %v515 = vrot.slane %v511, %v514
        %v532 = vunpack.c.l.b16 %v495
        %v533 = vunpack.c.l.b16 %v496
        %v534 = vunpack.c.l.b16 %v497
        %v535 = vunpack.c.l.b16 %v498
        %v536 = vunpack.c.l.b16 %v499
        %v537 = vunpack.c.l.b16 %v500
        %v538 = vunpack.c.l.b16 %v501
        %v539 = vunpack.c.l.b16 %v502
        %v540 = vunpack.c.l.b16 %v503
        %v541 = vunpack.c.l.b16 %v504
        %v542 = vunpack.c.l.b16 %v505
        %v543 = vunpack.c.l.b16 %v506
        %v544 = vunpack.c.l.b16 %v507
        %v545 = vunpack.c.l.b16 %v508
        %v546 = vunpack.c.l.b16 %v509
        %v547 = vunpack.c.l.b16 %v510
        %v548 = vpack.c.b16 %v533, %v532
        %v549 = vpack.c.b16 %v535, %v534
        %v550 = vpack.c.b16 %v537, %v536
        %v551 = vpack.c.b16 %v539, %v538
        %v552 = vpack.c.b16 %v541, %v540
        %v553 = vpack.c.b16 %v543, %v542
        %v554 = vpack.c.b16 %v545, %v544
        %v555 = vpack.c.b16 %v547, %v546
        %564 = vmatprep.subr.bf16.mxu0 0
        %565 = vmatpush1.bf16.msra.mxu0 %v555
        %566 = vmatprep.subr.bf16.mxu0 0
        %567 = vmatpush1.bf16.msra.mxu0 %v554
        %568 = vmatprep.subr.bf16.mxu0 0
        %569 = vmatpush1.bf16.msra.mxu0 %v553
        %570 = vmatprep.subr.bf16.mxu0 0
        %571 = vmatpush1.bf16.msra.mxu0 %v552
        %572 = vmatprep.subr.bf16.mxu0 0
        %573 = vmatpush1.bf16.msra.mxu0 %v551
        %574 = vmatprep.subr.bf16.mxu0 0
        %575 = vmatpush1.bf16.msra.mxu0 %v550
        %576 = vmatprep.subr.bf16.mxu0 0
        %577 = vmatpush1.bf16.msra.mxu0 %v549
        %578 = vmatprep.subr.bf16.mxu0 0
        %579 = vmatpush1.bf16.msra.mxu0 %v548
        %580 = vmatprep.subr.bf16.mxu0 0
        %581 = vmatpush2.bf16.msra.mxu0 0
        %582 = vmatprep.subr.bf16.mxu0 0
        %583 = vmatpush2.bf16.msra.mxu0 0
        %584 = vmatprep.subr.bf16.mxu0 0
        %585 = vmatpush2.bf16.msra.mxu0 0
        %586 = vmatprep.subr.bf16.mxu0 0
        %587 = vmatpush2.bf16.msra.mxu0 0
        %588 = vmatprep.subr.bf16.mxu0 0
        %589 = vmatpush2.bf16.msra.mxu0 0
        %590 = vmatprep.subr.bf16.mxu0 0
        %591 = vmatpush2.bf16.msra.mxu0 0
        %592 = vmatprep.subr.bf16.mxu0 0
        %593 = vmatpush2.bf16.msra.mxu0 0
        %594 = vmatprep.subr.bf16.mxu0 0
        %595 = vmatpush2.bf16.msra.mxu0 0
        %596 = vmatprep.mubr.bf16.mxu0 0
        %597 = vmatmul.mubr.bf16.gmra.mxu0 %v479
        %v598 = vpop.f32.mrf.mxu0
        %v599 = vadd.f32 %v515, %v598
        %v600 = vpop.f32.mrf.mxu0
        %v601 = vpop.f32.mrf.mxu0
        %v602 = vadd.f32 %v515, %v601
        %v603 = vpop.f32.mrf.mxu0
        %604 = vmatprep.mubr.bf16.mxu0 0
        %605 = vmatmul.mubr.bf16.gmra.mxu0 %v480
        %v606 = vpop.f32.mrf.mxu0
        %v607 = vadd.f32 %v515, %v606
        %v608 = vpop.f32.mrf.mxu0
        %v609 = vpop.f32.mrf.mxu0
        %v610 = vadd.f32 %v515, %v609
        %v611 = vpop.f32.mrf.mxu0
        %612 = vmatprep.mubr.bf16.mxu0 0
        %613 = vmatmul.mubr.bf16.gmra.mxu0 %v481
        %v614 = vpop.f32.mrf.mxu0
        %v615 = vadd.f32 %v515, %v614
        %v616 = vpop.f32.mrf.mxu0
        %v617 = vpop.f32.mrf.mxu0
        %v618 = vadd.f32 %v515, %v617
        %v619 = vpop.f32.mrf.mxu0
        %620 = vmatprep.mubr.bf16.mxu0 0
        %621 = vmatmul.mubr.bf16.gmra.mxu0 %v482
        %v622 = vpop.f32.mrf.mxu0
        %v623 = vadd.f32 %v515, %v622
        %v624 = vpop.f32.mrf.mxu0
        %v625 = vpop.f32.mrf.mxu0
        %v626 = vadd.f32 %v515, %v625
        %v627 = vpop.f32.mrf.mxu0
        %628 = vmatprep.mubr.bf16.mxu0 0
        %629 = vmatmul.mubr.bf16.gmra.mxu0 %v483
        %v630 = vpop.f32.mrf.mxu0
        %v631 = vadd.f32 %v515, %v630
        %v632 = vpop.f32.mrf.mxu0
        %v633 = vpop.f32.mrf.mxu0
        %v634 = vadd.f32 %v515, %v633
        %v635 = vpop.f32.mrf.mxu0
        %636 = vmatprep.mubr.bf16.mxu0 0
        %637 = vmatmul.mubr.bf16.gmra.mxu0 %v484
        %v638 = vpop.f32.mrf.mxu0
        %v639 = vadd.f32 %v515, %v638
        %v640 = vpop.f32.mrf.mxu0
        %v641 = vpop.f32.mrf.mxu0
        %v642 = vadd.f32 %v515, %v641
        %v643 = vpop.f32.mrf.mxu0
        %644 = vmatprep.mubr.bf16.mxu0 0
        %645 = vmatmul.mubr.bf16.gmra.mxu0 %v485
        %v646 = vpop.f32.mrf.mxu0
        %v647 = vadd.f32 %v515, %v646
        %v648 = vpop.f32.mrf.mxu0
        %v649 = vpop.f32.mrf.mxu0
        %v650 = vadd.f32 %v515, %v649
        %v651 = vpop.f32.mrf.mxu0
        %652 = vmatprep.mubr.bf16.mxu0 0
        %653 = vmatmul.mubr.bf16.gmra.mxu0 %v486
        %v654 = vpop.f32.mrf.mxu0
        %v655 = vadd.f32 %v515, %v654
        %v656 = vpop.f32.mrf.mxu0
        %v657 = vpop.f32.mrf.mxu0
        %v658 = vadd.f32 %v515, %v657
        %v659 = vpop.f32.mrf.mxu0
        %660 = vmatprep.mubr.bf16.mxu0 0
        %661 = vmatmul.mubr.bf16.gmra.mxu0 %v487
        %v662 = vpop.f32.mrf.mxu0
        %v663 = vadd.f32 %v515, %v662
        %v664 = vpop.f32.mrf.mxu0
        %v665 = vpop.f32.mrf.mxu0
        %v666 = vadd.f32 %v515, %v665
        %v667 = vpop.f32.mrf.mxu0
        %668 = vmatprep.mubr.bf16.mxu0 0
        %669 = vmatmul.mubr.bf16.gmra.mxu0 %v488
        %v670 = vpop.f32.mrf.mxu0
        %v671 = vadd.f32 %v515, %v670
        %v672 = vpop.f32.mrf.mxu0
        %v673 = vpop.f32.mrf.mxu0
        %v674 = vadd.f32 %v515, %v673
        %v675 = vpop.f32.mrf.mxu0
        %676 = vmatprep.mubr.bf16.mxu0 0
        %677 = vmatmul.mubr.bf16.gmra.mxu0 %v489
        %v678 = vpop.f32.mrf.mxu0
        %v679 = vadd.f32 %v515, %v678
        %v680 = vpop.f32.mrf.mxu0
        %v681 = vpop.f32.mrf.mxu0
        %v682 = vadd.f32 %v515, %v681
        %v683 = vpop.f32.mrf.mxu0
        %684 = vmatprep.mubr.bf16.mxu0 0
        %685 = vmatmul.mubr.bf16.gmra.mxu0 %v490
        %v686 = vpop.f32.mrf.mxu0
        %v687 = vadd.f32 %v515, %v686
        %v688 = vpop.f32.mrf.mxu0
        %v689 = vpop.f32.mrf.mxu0
        %v690 = vadd.f32 %v515, %v689
        %v691 = vpop.f32.mrf.mxu0
        %692 = vmatprep.mubr.bf16.mxu0 0
        %693 = vmatmul.mubr.bf16.gmra.mxu0 %v491
        %v694 = vpop.f32.mrf.mxu0
        %v695 = vadd.f32 %v515, %v694
        %v696 = vpop.f32.mrf.mxu0
        %v697 = vpop.f32.mrf.mxu0
        %v698 = vadd.f32 %v515, %v697
        %v699 = vpop.f32.mrf.mxu0
        %700 = vmatprep.mubr.bf16.mxu0 0
        %701 = vmatmul.mubr.bf16.gmra.mxu0 %v492
        %v702 = vpop.f32.mrf.mxu0
        %v703 = vadd.f32 %v515, %v702
        %v704 = vpop.f32.mrf.mxu0
        %v705 = vpop.f32.mrf.mxu0
        %v706 = vadd.f32 %v515, %v705
        %v707 = vpop.f32.mrf.mxu0
        %708 = vmatprep.mubr.bf16.mxu0 0
        %709 = vmatmul.mubr.bf16.gmra.mxu0 %v493
        %v710 = vpop.f32.mrf.mxu0
        %v711 = vadd.f32 %v515, %v710
        %v712 = vpop.f32.mrf.mxu0
        %v713 = vpop.f32.mrf.mxu0
        %v714 = vadd.f32 %v515, %v713
        %v715 = vpop.f32.mrf.mxu0
        %716 = vmatprep.mubr.bf16.mxu0 0
        %717 = vmatmul.mubr.bf16.gmra.mxu0 %v494
        %v718 = vpop.f32.mrf.mxu0
        %v719 = vadd.f32 %v515, %v718
        %v720 = vpop.f32.mrf.mxu0
        %v721 = vpop.f32.mrf.mxu0
        %v722 = vadd.f32 %v515, %v721
        %v723 = vpop.f32.mrf.mxu0
        %724 = vdwg.mxu0
        %v725 = vmax.f32 %v599, 0.0
        %v726 = vmax.f32 %v602, 0.0
        %v727 = vmax.f32 %v607, 0.0
        %v728 = vmax.f32 %v610, 0.0
        %v729 = vmax.f32 %v615, 0.0
        %v730 = vmax.f32 %v618, 0.0
        %v731 = vmax.f32 %v623, 0.0
        %v732 = vmax.f32 %v626, 0.0
        %v733 = vmax.f32 %v631, 0.0
        %v734 = vmax.f32 %v634, 0.0
        %v735 = vmax.f32 %v639, 0.0
        %v736 = vmax.f32 %v642, 0.0
        %v737 = vmax.f32 %v647, 0.0
        %v738 = vmax.f32 %v650, 0.0
        %v739 = vmax.f32 %v655, 0.0
        %v740 = vmax.f32 %v658, 0.0
        %v741 = vmax.f32 %v663, 0.0
        %v742 = vmax.f32 %v666, 0.0
        %v743 = vmax.f32 %v671, 0.0
        %v744 = vmax.f32 %v674, 0.0
        %v745 = vmax.f32 %v679, 0.0
        %v746 = vmax.f32 %v682, 0.0
        %v747 = vmax.f32 %v687, 0.0
        %v748 = vmax.f32 %v690, 0.0
        %v749 = vmax.f32 %v695, 0.0
        %v750 = vmax.f32 %v698, 0.0
        %v751 = vmax.f32 %v703, 0.0
        %v752 = vmax.f32 %v706, 0.0
        %v753 = vmax.f32 %v711, 0.0
        %v754 = vmax.f32 %v714, 0.0
        %v755 = vmax.f32 %v719, 0.0
        %v756 = vmax.f32 %v722, 0.0
        %v757 = vpack.c.bf16 %v726, %v725
        %v758 = vpack.c.bf16 %v728, %v727
        %v759 = vpack.c.bf16 %v730, %v729
        %v760 = vpack.c.bf16 %v732, %v731
        %v761 = vpack.c.bf16 %v734, %v733
        %v762 = vpack.c.bf16 %v736, %v735
        %v763 = vpack.c.bf16 %v738, %v737
        %v764 = vpack.c.bf16 %v740, %v739
        %v765 = vpack.c.bf16 %v742, %v741
        %v766 = vpack.c.bf16 %v744, %v743
        %v767 = vpack.c.bf16 %v746, %v745
        %v768 = vpack.c.bf16 %v748, %v747
        %v769 = vpack.c.bf16 %v750, %v749
        %v770 = vpack.c.bf16 %v752, %v751
        %v771 = vpack.c.bf16 %v754, %v753
        %v772 = vpack.c.bf16 %v756, %v755
        %v789 = vunpack.c.l.b16 %v757
        %v790 = vunpack.c.h.b16 %v757
        %v791 = vunpack.c.l.b16 %v758
        %v792 = vunpack.c.h.b16 %v758
        %v793 = vunpack.c.l.b16 %v759
        %v794 = vunpack.c.h.b16 %v759
        %v795 = vunpack.c.l.b16 %v760
        %v796 = vunpack.c.h.b16 %v760
        %v797 = vunpack.c.l.b16 %v761
        %v798 = vunpack.c.h.b16 %v761
        %v799 = vunpack.c.l.b16 %v762
        %v800 = vunpack.c.h.b16 %v762
        %v801 = vunpack.c.l.b16 %v763
        %v802 = vunpack.c.h.b16 %v763
        %v803 = vunpack.c.l.b16 %v764
        %v804 = vunpack.c.h.b16 %v764
        %v805 = vunpack.c.l.b16 %v765
        %v806 = vunpack.c.h.b16 %v765
        %v807 = vunpack.c.l.b16 %v766
        %v808 = vunpack.c.h.b16 %v766
        %v809 = vunpack.c.l.b16 %v767
        %v810 = vunpack.c.h.b16 %v767
        %v811 = vunpack.c.l.b16 %v768
        %v812 = vunpack.c.h.b16 %v768
        %v813 = vunpack.c.l.b16 %v769
        %v814 = vunpack.c.h.b16 %v769
        %v815 = vunpack.c.l.b16 %v770
        %v816 = vunpack.c.h.b16 %v770
        %v817 = vunpack.c.l.b16 %v771
        %v818 = vunpack.c.h.b16 %v771
        %v819 = vunpack.c.l.b16 %v772
        %v820 = vunpack.c.h.b16 %v772
        %v821 = vpack.c.b16 %v789, %v789
        %v822 = vpack.c.b16 %v790, %v790
        %v823 = vpack.c.b16 %v791, %v791
        %v824 = vpack.c.b16 %v792, %v792
        %v825 = vpack.c.b16 %v793, %v793
        %v826 = vpack.c.b16 %v794, %v794
        %v827 = vpack.c.b16 %v795, %v795
        %v828 = vpack.c.b16 %v796, %v796
        %v829 = vpack.c.b16 %v797, %v797
        %v830 = vpack.c.b16 %v798, %v798
        %v831 = vpack.c.b16 %v799, %v799
        %v832 = vpack.c.b16 %v800, %v800
        %v833 = vpack.c.b16 %v801, %v801
        %v834 = vpack.c.b16 %v802, %v802
        %v835 = vpack.c.b16 %v803, %v803
        %v836 = vpack.c.b16 %v804, %v804
        %v837 = vpack.c.b16 %v805, %v805
        %v838 = vpack.c.b16 %v806, %v806
        %v839 = vpack.c.b16 %v807, %v807
        %v840 = vpack.c.b16 %v808, %v808
        %v841 = vpack.c.b16 %v809, %v809
        %v842 = vpack.c.b16 %v810, %v810
        %v843 = vpack.c.b16 %v811, %v811
        %v844 = vpack.c.b16 %v812, %v812
        %v845 = vpack.c.b16 %v813, %v813
        %v846 = vpack.c.b16 %v814, %v814
        %v847 = vpack.c.b16 %v815, %v815
        %v848 = vpack.c.b16 %v816, %v816
        %v849 = vpack.c.b16 %v817, %v817
        %v850 = vpack.c.b16 %v818, %v818
        %v851 = vpack.c.b16 %v819, %v819
        %v852 = vpack.c.b16 %v820, %v820
        %885 = vst [vmem:[%s282] sm:$0xf] %v821
        %886 = vst [vmem:[%s282 + $0x4] sm:$0xf] %v822
        %887 = vst [vmem:[%s282 + $0x8] sm:$0xf] %v823
        %888 = vst [vmem:[%s282 + $0xc] sm:$0xf] %v824
        %889 = vst [vmem:[%s282 + $0x10] sm:$0xf] %v825
        %890 = vst [vmem:[%s282 + $0x14] sm:$0xf] %v826
        %891 = vst [vmem:[%s282 + $0x18] sm:$0xf] %v827
        %892 = vst [vmem:[%s282 + $0x1c] sm:$0xf] %v828
        %893 = vst [vmem:[%s282 + $0x20] sm:$0xf] %v829
        %894 = vst [vmem:[%s282 + $0x24] sm:$0xf] %v830
        %895 = vst [vmem:[%s282 + $0x28] sm:$0xf] %v831
        %896 = vst [vmem:[%s282 + $0x2c] sm:$0xf] %v832
        %897 = vst [vmem:[%s282 + $0x30] sm:$0xf] %v833
        %898 = vst [vmem:[%s282 + $0x34] sm:$0xf] %v834
        %899 = vst [vmem:[%s282 + $0x38] sm:$0xf] %v835
        %900 = vst [vmem:[%s282 + $0x3c] sm:$0xf] %v836
        %901 = vst [vmem:[%s282 + $0x40] sm:$0xf] %v837
        %902 = vst [vmem:[%s282 + $0x44] sm:$0xf] %v838
        %903 = vst [vmem:[%s282 + $0x48] sm:$0xf] %v839
        %904 = vst [vmem:[%s282 + $0x4c] sm:$0xf] %v840
        %905 = vst [vmem:[%s282 + $0x50] sm:$0xf] %v841
        %906 = vst [vmem:[%s282 + $0x54] sm:$0xf] %v842
        %907 = vst [vmem:[%s282 + $0x58] sm:$0xf] %v843
        %908 = vst [vmem:[%s282 + $0x5c] sm:$0xf] %v844
        %909 = vst [vmem:[%s282 + $0x60] sm:$0xf] %v845
        %910 = vst [vmem:[%s282 + $0x64] sm:$0xf] %v846
        %911 = vst [vmem:[%s282 + $0x68] sm:$0xf] %v847
        %912 = vst [vmem:[%s282 + $0x6c] sm:$0xf] %v848
        %913 = vst [vmem:[%s282 + $0x70] sm:$0xf] %v849
        %914 = vst [vmem:[%s282 + $0x74] sm:$0xf] %v850
        %915 = vst [vmem:[%s282 + $0x78] sm:$0xf] %v851
        %916 = vst [vmem:[%s282 + $0x7c] sm:$0xf] %v852
        %917 = vst [vmem:[#allocation2] sm:$0xff] %v725
        %918 = vst [vmem:[#allocation2 + $0x8] sm:$0xff] %v726
        %919 = vst [vmem:[#allocation2 + $0x10] sm:$0xff] %v727
        %920 = vst [vmem:[#allocation2 + $0x18] sm:$0xff] %v728
        %921 = vst [vmem:[#allocation2 + $0x20] sm:$0xff] %v729
        %922 = vst [vmem:[#allocation2 + $0x28] sm:$0xff] %v730
        %923 = vst [vmem:[#allocation2 + $0x30] sm:$0xff] %v731
        %924 = vst [vmem:[#allocation2 + $0x38] sm:$0xff] %v732
        %925 = vst [vmem:[#allocation2 + $0x40] sm:$0xff] %v733
        %926 = vst [vmem:[#allocation2 + $0x48] sm:$0xff] %v734
        %927 = vst [vmem:[#allocation2 + $0x50] sm:$0xff] %v735
        %928 = vst [vmem:[#allocation2 + $0x58] sm:$0xff] %v736
        %929 = vst [vmem:[#allocation2 + $0x60] sm:$0xff] %v737
        %930 = vst [vmem:[#allocation2 + $0x68] sm:$0xff] %v738
        %931 = vst [vmem:[#allocation2 + $0x70] sm:$0xff] %v739
        %932 = vst [vmem:[#allocation2 + $0x78] sm:$0xff] %v740
        %933 = vst [vmem:[#allocation2 + $0x80] sm:$0xff] %v741
        %934 = vst [vmem:[#allocation2 + $0x88] sm:$0xff] %v742
        %935 = vst [vmem:[#allocation2 + $0x90] sm:$0xff] %v743
        %936 = vst [vmem:[#allocation2 + $0x98] sm:$0xff] %v744
        %937 = vst [vmem:[#allocation2 + $0xa0] sm:$0xff] %v745
        %938 = vst [vmem:[#allocation2 + $0xa8] sm:$0xff] %v746
        %939 = vst [vmem:[#allocation2 + $0xb0] sm:$0xff] %v747
        %940 = vst [vmem:[#allocation2 + $0xb8] sm:$0xff] %v748
        %941 = vst [vmem:[#allocation2 + $0xc0] sm:$0xff] %v749
        %942 = vst [vmem:[#allocation2 + $0xc8] sm:$0xff] %v750
        %943 = vst [vmem:[#allocation2 + $0xd0] sm:$0xff] %v751
        %944 = vst [vmem:[#allocation2 + $0xd8] sm:$0xff] %v752
        %945 = vst [vmem:[#allocation2 + $0xe0] sm:$0xff] %v753
        %946 = vst [vmem:[#allocation2 + $0xe8] sm:$0xff] %v754
        %947 = vst [vmem:[#allocation2 + $0xf0] sm:$0xff] %v755
        %948 = vst [vmem:[#allocation2 + $0xf8] sm:$0xff] %v756
        %v949 = vld [vmem:[#allocation2] ss:$2 sm:$0xff]
        %950 = vst [vmem:[#allocation3] sm:$0xff] %v949
        %s951 = scalar_lea.vmem [#allocation2], 32
        %v952 = vld [vmem:[%s951] ss:$2 sm:$0xff]
        %953 = vst [vmem:[#allocation3 + $0x8] sm:$0xff] %v952
        %s954 = scalar_lea.vmem [#allocation2], 64
        %v955 = vld [vmem:[%s954] ss:$2 sm:$0xff]
        %956 = vst [vmem:[#allocation3 + $0x10] sm:$0xff] %v955
        %s957 = scalar_lea.vmem [#allocation2], 96
        %v958 = vld [vmem:[%s957] ss:$2 sm:$0xff]
        %959 = vst [vmem:[#allocation3 + $0x18] sm:$0xff] %v958
        %s960 = scalar_lea.vmem [#allocation2], 128
        %v961 = vld [vmem:[%s960] ss:$2 sm:$0xff]
        %962 = vst [vmem:[#allocation3 + $0x20] sm:$0xff] %v961
        %s963 = scalar_lea.vmem [#allocation2], 160
        %v964 = vld [vmem:[%s963] ss:$2 sm:$0xff]
        %965 = vst [vmem:[#allocation3 + $0x28] sm:$0xff] %v964
        %s966 = scalar_lea.vmem [#allocation2], 192
        %v967 = vld [vmem:[%s966] ss:$2 sm:$0xff]
        %968 = vst [vmem:[#allocation3 + $0x30] sm:$0xff] %v967
        %s969 = scalar_lea.vmem [#allocation2], 224
        %v970 = vld [vmem:[%s969] ss:$2 sm:$0xff]
        %971 = vst [vmem:[#allocation3 + $0x38] sm:$0xff] %v970
        %v972 = vld [vmem:[#allocation3] sm:$0xff]
        %v973 = vld [vmem:[#allocation3 + $0x8] sm:$0xff]
        %v974 = vld [vmem:[#allocation3 + $0x10] sm:$0xff]
        %v975 = vld [vmem:[#allocation3 + $0x18] sm:$0xff]
        %v976 = vld [vmem:[#allocation3 + $0x20] sm:$0xff]
        %v977 = vld [vmem:[#allocation3 + $0x28] sm:$0xff]
        %v978 = vld [vmem:[#allocation3 + $0x30] sm:$0xff]
        %v979 = vld [vmem:[#allocation3 + $0x38] sm:$0xff]
        %v980 = vpack.c.bf16 %v973, %v972
        %v981 = vpack.c.bf16 %v975, %v974
        %v982 = vpack.c.bf16 %v977, %v976
        %v983 = vpack.c.bf16 %v979, %v978
        %s984 = scalar_lea.vmem %s1, 64
        %v985 = vld [vmem:[%s984] sm:$0xf]
        %v986 = vld [vmem:[%s984 + $0x4] sm:$0xf]
        %v987 = vld [vmem:[%s984 + $0x8] sm:$0xf]
        %v988 = vld [vmem:[%s984 + $0xc] sm:$0xf]
        %v989 = vld [vmem:[%s984 + $0x10] sm:$0xf]
        %v990 = vld [vmem:[%s984 + $0x14] sm:$0xf]
        %v991 = vld [vmem:[%s984 + $0x18] sm:$0xf]
        %v992 = vld [vmem:[%s984 + $0x1c] sm:$0xf]
        %v993 = vld [vmem:[%s984 + $0x20] sm:$0xf]
        %v994 = vld [vmem:[%s984 + $0x24] sm:$0xf]
        %v995 = vld [vmem:[%s984 + $0x28] sm:$0xf]
        %v996 = vld [vmem:[%s984 + $0x2c] sm:$0xf]
        %v997 = vld [vmem:[%s984 + $0x30] sm:$0xf]
        %v998 = vld [vmem:[%s984 + $0x34] sm:$0xf]
        %v999 = vld [vmem:[%s984 + $0x38] sm:$0xf]
        %v1000 = vld [vmem:[%s984 + $0x3c] sm:$0xf]
        %v1001 = vld [vmem:[%s2 + $0x1] sm:$0x1]
        %v1002 = vlaneseq
        %v1003 = vshrl.u32 %v1002, 7
        %v1004 = vsub.s32 0, %v1003
        %v1005 = vrot.slane %v1001, %v1004
        %v1022 = vunpack.c.l.b16 %v985
        %v1023 = vunpack.c.l.b16 %v986
        %v1024 = vunpack.c.l.b16 %v987
        %v1025 = vunpack.c.l.b16 %v988
        %v1026 = vunpack.c.l.b16 %v989
        %v1027 = vunpack.c.l.b16 %v990
        %v1028 = vunpack.c.l.b16 %v991
        %v1029 = vunpack.c.l.b16 %v992
        %v1030 = vunpack.c.l.b16 %v993
        %v1031 = vunpack.c.l.b16 %v994
        %v1032 = vunpack.c.l.b16 %v995
        %v1033 = vunpack.c.l.b16 %v996
        %v1034 = vunpack.c.l.b16 %v997
        %v1035 = vunpack.c.l.b16 %v998
        %v1036 = vunpack.c.l.b16 %v999
        %v1037 = vunpack.c.l.b16 %v1000
        %v1038 = vpack.c.b16 %v1023, %v1022
        %v1039 = vpack.c.b16 %v1025, %v1024
        %v1040 = vpack.c.b16 %v1027, %v1026
        %v1041 = vpack.c.b16 %v1029, %v1028
        %v1042 = vpack.c.b16 %v1031, %v1030
        %v1043 = vpack.c.b16 %v1033, %v1032
        %v1044 = vpack.c.b16 %v1035, %v1034
        %v1045 = vpack.c.b16 %v1037, %v1036
        %1054 = vmatprep.subr.bf16.mxu0 0
        %1055 = vmatpush1.bf16.msra.mxu0 %v1045
        %1056 = vmatprep.subr.bf16.mxu0 0
        %1057 = vmatpush1.bf16.msra.mxu0 %v1044
        %1058 = vmatprep.subr.bf16.mxu0 0
        %1059 = vmatpush1.bf16.msra.mxu0 %v1043
        %1060 = vmatprep.subr.bf16.mxu0 0
        %1061 = vmatpush1.bf16.msra.mxu0 %v1042
        %1062 = vmatprep.subr.bf16.mxu0 0
        %1063 = vmatpush1.bf16.msra.mxu0 %v1041
        %1064 = vmatprep.subr.bf16.mxu0 0
        %1065 = vmatpush1.bf16.msra.mxu0 %v1040
        %1066 = vmatprep.subr.bf16.mxu0 0
        %1067 = vmatpush1.bf16.msra.mxu0 %v1039
        %1068 = vmatprep.subr.bf16.mxu0 0
        %1069 = vmatpush1.bf16.msra.mxu0 %v1038
        %1070 = vmatprep.subr.bf16.mxu0 0
        %1071 = vmatpush2.bf16.msra.mxu0 0
        %1072 = vmatprep.subr.bf16.mxu0 0
        %1073 = vmatpush2.bf16.msra.mxu0 0
        %1074 = vmatprep.subr.bf16.mxu0 0
        %1075 = vmatpush2.bf16.msra.mxu0 0
        %1076 = vmatprep.subr.bf16.mxu0 0
        %1077 = vmatpush2.bf16.msra.mxu0 0
        %1078 = vmatprep.subr.bf16.mxu0 0
        %1079 = vmatpush2.bf16.msra.mxu0 0
        %1080 = vmatprep.subr.bf16.mxu0 0
        %1081 = vmatpush2.bf16.msra.mxu0 0
        %1082 = vmatprep.subr.bf16.mxu0 0
        %1083 = vmatpush2.bf16.msra.mxu0 0
        %1084 = vmatprep.subr.bf16.mxu0 0
        %1085 = vmatpush2.bf16.msra.mxu0 0
        %1086 = vmatprep.mubr.bf16.mxu0 0
        %1087 = vmatmul.mubr.bf16.gmra.mxu0 %v980
        %v1088 = vpop.f32.mrf.mxu0
        %v1089 = vadd.f32 %v1005, %v1088
        %v1090 = vpop.f32.mrf.mxu0
        %v1091 = vpop.f32.mrf.mxu0
        %v1092 = vadd.f32 %v1005, %v1091
        %v1093 = vpop.f32.mrf.mxu0
        %1094 = vmatprep.mubr.bf16.mxu0 0
        %1095 = vmatmul.mubr.bf16.gmra.mxu0 %v981
        %v1096 = vpop.f32.mrf.mxu0
        %v1097 = vadd.f32 %v1005, %v1096
        %v1098 = vpop.f32.mrf.mxu0
        %v1099 = vpop.f32.mrf.mxu0
        %v1100 = vadd.f32 %v1005, %v1099
        %v1101 = vpop.f32.mrf.mxu0
        %1102 = vmatprep.mubr.bf16.mxu0 0
        %1103 = vmatmul.mubr.bf16.gmra.mxu0 %v982
        %v1104 = vpop.f32.mrf.mxu0
        %v1105 = vadd.f32 %v1005, %v1104
        %v1106 = vpop.f32.mrf.mxu0
        %v1107 = vpop.f32.mrf.mxu0
        %v1108 = vadd.f32 %v1005, %v1107
        %v1109 = vpop.f32.mrf.mxu0
        %1110 = vmatprep.mubr.bf16.mxu0 0
        %1111 = vmatmul.mubr.bf16.gmra.mxu0 %v983
        %v1112 = vpop.f32.mrf.mxu0
        %v1113 = vadd.f32 %v1005, %v1112
        %v1114 = vpop.f32.mrf.mxu0
        %v1115 = vpop.f32.mrf.mxu0
        %v1116 = vadd.f32 %v1005, %v1115
        %v1117 = vpop.f32.mrf.mxu0
        %1118 = vdwg.mxu0
        %v1119 = vmax.f32 %v1089, 0.0
        %v1120 = vmax.f32 %v1092, 0.0
        %v1121 = vmax.f32 %v1097, 0.0
        %v1122 = vmax.f32 %v1100, 0.0
        %v1123 = vmax.f32 %v1105, 0.0
        %v1124 = vmax.f32 %v1108, 0.0
        %v1125 = vmax.f32 %v1113, 0.0
        %v1126 = vmax.f32 %v1116, 0.0
        %v1127 = vpack.c.bf16 %v1120, %v1119
        %v1128 = vpack.c.bf16 %v1122, %v1121
        %v1129 = vpack.c.bf16 %v1124, %v1123
        %v1130 = vpack.c.bf16 %v1126, %v1125
        %v1135 = vunpack.c.l.b16 %v1127
        %v1136 = vunpack.c.h.b16 %v1127
        %v1137 = vunpack.c.l.b16 %v1128
        %v1138 = vunpack.c.h.b16 %v1128
        %v1139 = vunpack.c.l.b16 %v1129
        %v1140 = vunpack.c.h.b16 %v1129
        %v1141 = vunpack.c.l.b16 %v1130
        %v1142 = vunpack.c.h.b16 %v1130
        %v1143 = vpack.c.b16 %v1135, %v1135
        %v1144 = vpack.c.b16 %v1136, %v1136
        %v1145 = vpack.c.b16 %v1137, %v1137
        %v1146 = vpack.c.b16 %v1138, %v1138
        %v1147 = vpack.c.b16 %v1139, %v1139
        %v1148 = vpack.c.b16 %v1140, %v1140
        %v1149 = vpack.c.b16 %v1141, %v1141
        %v1150 = vpack.c.b16 %v1142, %v1142
        %1159 = vst [vmem:[%s289] sm:$0xf] %v1143
        %1160 = vst [vmem:[%s289 + $0x4] sm:$0xf] %v1144
        %1161 = vst [vmem:[%s289 + $0x8] sm:$0xf] %v1145
        %1162 = vst [vmem:[%s289 + $0xc] sm:$0xf] %v1146
        %1163 = vst [vmem:[%s289 + $0x10] sm:$0xf] %v1147
        %1164 = vst [vmem:[%s289 + $0x14] sm:$0xf] %v1148
        %1165 = vst [vmem:[%s289 + $0x18] sm:$0xf] %v1149
        %1166 = vst [vmem:[%s289 + $0x1c] sm:$0xf] %v1150
        %1167 = vst [vmem:[#allocation3] sm:$0xff] %v1119
        %1168 = vst [vmem:[#allocation3 + $0x8] sm:$0xff] %v1120
        %1169 = vst [vmem:[#allocation3 + $0x10] sm:$0xff] %v1121
        %1170 = vst [vmem:[#allocation3 + $0x18] sm:$0xff] %v1122
        %1171 = vst [vmem:[#allocation3 + $0x20] sm:$0xff] %v1123
        %1172 = vst [vmem:[#allocation3 + $0x28] sm:$0xff] %v1124
        %1173 = vst [vmem:[#allocation3 + $0x30] sm:$0xff] %v1125
        %1174 = vst [vmem:[#allocation3 + $0x38] sm:$0xff] %v1126
        %v1175 = vld [vmem:[#allocation3] ss:$2 sm:$0xf]
        %1176 = vst [vmem:[#allocation4] sm:$0xf] %v1175
        %s1177 = scalar_lea.vmem [#allocation3], 16
        %v1178 = vld [vmem:[%s1177] ss:$2 sm:$0xf]
        %1179 = vst [vmem:[#allocation4 + $0x4] sm:$0xf] %v1178
        %s1180 = scalar_lea.vmem [#allocation3], 32
        %v1181 = vld [vmem:[%s1180] ss:$2 sm:$0xf]
        %1182 = vst [vmem:[#allocation4 + $0x8] sm:$0xf] %v1181
        %s1183 = scalar_lea.vmem [#allocation3], 48
        %v1184 = vld [vmem:[%s1183] ss:$2 sm:$0xf]
        %1185 = vst [vmem:[#allocation4 + $0xc] sm:$0xf] %v1184
        %v1186 = vld [vmem:[#allocation4] sm:$0xff]
        %v1187 = vld [vmem:[#allocation4 + $0x8] sm:$0xff]
        %v1188 = vpack.c.bf16 %v1187, %v1186
        %s1189 = scalar_lea.vmem %s1, 128
        %v1190 = vld [vmem:[%s1189] sm:$0xf]
        %v1191 = vld [vmem:[%s1189 + $0x4] sm:$0xf]
        %v1192 = vld [vmem:[%s1189 + $0x8] sm:$0xf]
        %v1193 = vld [vmem:[%s1189 + $0xc] sm:$0xf]
        %v1194 = vld [vmem:[%s1189 + $0x10] sm:$0xf]
        %v1195 = vld [vmem:[%s1189 + $0x14] sm:$0xf]
        %v1196 = vld [vmem:[%s1189 + $0x18] sm:$0xf]
        %v1197 = vld [vmem:[%s1189 + $0x1c] sm:$0xf]
        %v1198 = vld [vmem:[%s1189 + $0x20] sm:$0xf]
        %v1199 = vld [vmem:[%s1189 + $0x24] sm:$0xf]
        %v1200 = vld [vmem:[%s1189 + $0x28] sm:$0xf]
        %v1201 = vld [vmem:[%s1189 + $0x2c] sm:$0xf]
        %v1202 = vld [vmem:[%s1189 + $0x30] sm:$0xf]
        %v1203 = vld [vmem:[%s1189 + $0x34] sm:$0xf]
        %v1204 = vld [vmem:[%s1189 + $0x38] sm:$0xf]
        %v1205 = vld [vmem:[%s1189 + $0x3c] sm:$0xf]
        %v1206 = vld [vmem:[%s2 + $0x2] sm:$0x1]
        %v1207 = vlaneseq
        %v1208 = vshrl.u32 %v1207, 7
        %v1209 = vsub.s32 0, %v1208
        %v1210 = vrot.slane %v1206, %v1209
        %v1227 = vunpack.c.l.b16 %v1190
        %v1228 = vunpack.c.l.b16 %v1191
        %v1229 = vunpack.c.l.b16 %v1192
        %v1230 = vunpack.c.l.b16 %v1193
        %v1231 = vunpack.c.l.b16 %v1194
        %v1232 = vunpack.c.l.b16 %v1195
        %v1233 = vunpack.c.l.b16 %v1196
        %v1234 = vunpack.c.l.b16 %v1197
        %v1235 = vunpack.c.l.b16 %v1198
        %v1236 = vunpack.c.l.b16 %v1199
        %v1237 = vunpack.c.l.b16 %v1200
        %v1238 = vunpack.c.l.b16 %v1201
        %v1239 = vunpack.c.l.b16 %v1202
        %v1240 = vunpack.c.l.b16 %v1203
        %v1241 = vunpack.c.l.b16 %v1204
        %v1242 = vunpack.c.l.b16 %v1205
        %v1243 = vpack.c.b16 %v1228, %v1227
        %v1244 = vpack.c.b16 %v1230, %v1229
        %v1245 = vpack.c.b16 %v1232, %v1231
        %v1246 = vpack.c.b16 %v1234, %v1233
        %v1247 = vpack.c.b16 %v1236, %v1235
        %v1248 = vpack.c.b16 %v1238, %v1237
        %v1249 = vpack.c.b16 %v1240, %v1239
        %v1250 = vpack.c.b16 %v1242, %v1241
        %1259 = vmatprep.subr.bf16.mxu0 0
        %1260 = vmatpush1.bf16.msra.mxu0 %v1250
        %1261 = vmatprep.subr.bf16.mxu0 0
        %1262 = vmatpush1.bf16.msra.mxu0 %v1249
        %1263 = vmatprep.subr.bf16.mxu0 0
        %1264 = vmatpush1.bf16.msra.mxu0 %v1248
        %1265 = vmatprep.subr.bf16.mxu0 0
        %1266 = vmatpush1.bf16.msra.mxu0 %v1247
        %1267 = vmatprep.subr.bf16.mxu0 0
        %1268 = vmatpush1.bf16.msra.mxu0 %v1246
        %1269 = vmatprep.subr.bf16.mxu0 0
        %1270 = vmatpush1.bf16.msra.mxu0 %v1245
        %1271 = vmatprep.subr.bf16.mxu0 0
        %1272 = vmatpush1.bf16.msra.mxu0 %v1244
        %1273 = vmatprep.subr.bf16.mxu0 0
        %1274 = vmatpush1.bf16.msra.mxu0 %v1243
        %1275 = vmatprep.subr.bf16.mxu0 0
        %1276 = vmatpush2.bf16.msra.mxu0 0
        %1277 = vmatprep.subr.bf16.mxu0 0
        %1278 = vmatpush2.bf16.msra.mxu0 0
        %1279 = vmatprep.subr.bf16.mxu0 0
        %1280 = vmatpush2.bf16.msra.mxu0 0
        %1281 = vmatprep.subr.bf16.mxu0 0
        %1282 = vmatpush2.bf16.msra.mxu0 0
        %1283 = vmatprep.subr.bf16.mxu0 0
        %1284 = vmatpush2.bf16.msra.mxu0 0
        %1285 = vmatprep.subr.bf16.mxu0 0
        %1286 = vmatpush2.bf16.msra.mxu0 0
        %1287 = vmatprep.subr.bf16.mxu0 0
        %1288 = vmatpush2.bf16.msra.mxu0 0
        %1289 = vmatprep.subr.bf16.mxu0 0
        %1290 = vmatpush2.bf16.msra.mxu0 0
        %1291 = vmatprep.mubr.bf16.mxu0 0
        %1292 = vmatmul.mubr.bf16.gmra.mxu0 %v1188
        %v1293 = vpop.f32.mrf.mxu0
        %v1294 = vadd.f32 %v1210, %v1293
        %v1295 = vpop.f32.mrf.mxu0
        %v1296 = vpop.f32.mrf.mxu0
        %v1297 = vadd.f32 %v1210, %v1296
        %v1298 = vpop.f32.mrf.mxu0
        %1299 = vdwg.mxu0
        %v1300 = vmax.f32 %v1294, 0.0
        %v1301 = vmax.f32 %v1297, 0.0
        %v1302 = vpack.c.bf16 %v1301, %v1300
        %v1304 = vunpack.c.l.b16 %v1302
        %v1305 = vunpack.c.h.b16 %v1302
        %v1306 = vpack.c.b16 %v1304, %v1304
        %v1307 = vpack.c.b16 %v1305, %v1305
        %1310 = vst [vmem:[%s296] sm:$0xf] %v1306
        %1311 = vst [vmem:[%s296 + $0x4] sm:$0xf] %v1307
        %1312 = vst [vmem:[#allocation4] sm:$0xff] %v1300
        %1313 = vst [vmem:[#allocation4 + $0x8] sm:$0xff] %v1301
        %v1314 = vld [vmem:[#allocation4] ss:$2 sm:$0x3]
        %1315 = vst [vmem:[#allocation5] sm:$0x3] %v1314
        %s1316 = scalar_lea.vmem [#allocation4], 8
        %v1317 = vld [vmem:[%s1316] ss:$2 sm:$0x3]
        %1318 = vst [vmem:[#allocation5 + $0x2] sm:$0x3] %v1317
        %v1319 = vld [vmem:[#allocation5] sm:$0xf]
        %v1320 = vpack.c.bf16 %v1319, %v1319
        %s1321 = scalar_lea.vmem %s1, 192
        %v1322 = vld [vmem:[%s1321] sm:$0xf]
        %v1323 = vld [vmem:[%s1321 + $0x4] sm:$0xf]
        %v1324 = vld [vmem:[%s1321 + $0x8] sm:$0xf]
        %v1325 = vld [vmem:[%s1321 + $0xc] sm:$0xf]
        %v1326 = vld [vmem:[%s1321 + $0x10] sm:$0xf]
        %v1327 = vld [vmem:[%s1321 + $0x14] sm:$0xf]
        %v1328 = vld [vmem:[%s1321 + $0x18] sm:$0xf]
        %v1329 = vld [vmem:[%s1321 + $0x1c] sm:$0xf]
        %v1330 = vld [vmem:[%s1321 + $0x20] sm:$0xf]
        %v1331 = vld [vmem:[%s1321 + $0x24] sm:$0xf]
        %v1332 = vld [vmem:[%s1321 + $0x28] sm:$0xf]
        %v1333 = vld [vmem:[%s1321 + $0x2c] sm:$0xf]
        %v1334 = vld [vmem:[%s1321 + $0x30] sm:$0xf]
        %v1335 = vld [vmem:[%s1321 + $0x34] sm:$0xf]
        %v1336 = vld [vmem:[%s1321 + $0x38] sm:$0xf]
        %v1337 = vld [vmem:[%s1321 + $0x3c] sm:$0xf]
        %v1338 = vld [vmem:[%s2 + $0x3] sm:$0x1]
        %v1339 = vlaneseq
        %v1340 = vshrl.u32 %v1339, 7
        %v1341 = vsub.s32 0, %v1340
        %v1342 = vrot.slane %v1338, %v1341
        %v1359 = vunpack.c.l.b16 %v1322
        %v1360 = vunpack.c.l.b16 %v1323
        %v1361 = vunpack.c.l.b16 %v1324
        %v1362 = vunpack.c.l.b16 %v1325
        %v1363 = vunpack.c.l.b16 %v1326
        %v1364 = vunpack.c.l.b16 %v1327
        %v1365 = vunpack.c.l.b16 %v1328
        %v1366 = vunpack.c.l.b16 %v1329
        %v1367 = vunpack.c.l.b16 %v1330
        %v1368 = vunpack.c.l.b16 %v1331
        %v1369 = vunpack.c.l.b16 %v1332
        %v1370 = vunpack.c.l.b16 %v1333
        %v1371 = vunpack.c.l.b16 %v1334
        %v1372 = vunpack.c.l.b16 %v1335
        %v1373 = vunpack.c.l.b16 %v1336
        %v1374 = vunpack.c.l.b16 %v1337
        %v1375 = vpack.c.b16 %v1360, %v1359
        %v1376 = vpack.c.b16 %v1362, %v1361
        %v1377 = vpack.c.b16 %v1364, %v1363
        %v1378 = vpack.c.b16 %v1366, %v1365
        %v1379 = vpack.c.b16 %v1368, %v1367
        %v1380 = vpack.c.b16 %v1370, %v1369
        %v1381 = vpack.c.b16 %v1372, %v1371
        %v1382 = vpack.c.b16 %v1374, %v1373
        %1391 = vmatprep.subr.bf16.mxu0 0
        %1392 = vmatpush1.bf16.msra.mxu0 %v1382
        %1393 = vmatprep.subr.bf16.mxu0 0
        %1394 = vmatpush1.bf16.msra.mxu0 %v1381
        %1395 = vmatprep.subr.bf16.mxu0 0
        %1396 = vmatpush1.bf16.msra.mxu0 %v1380
        %1397 = vmatprep.subr.bf16.mxu0 0
        %1398 = vmatpush1.bf16.msra.mxu0 %v1379
        %1399 = vmatprep.subr.bf16.mxu0 0
        %1400 = vmatpush1.bf16.msra.mxu0 %v1378
        %1401 = vmatprep.subr.bf16.mxu0 0
        %1402 = vmatpush1.bf16.msra.mxu0 %v1377
        %1403 = vmatprep.subr.bf16.mxu0 0
        %1404 = vmatpush1.bf16.msra.mxu0 %v1376
        %1405 = vmatprep.subr.bf16.mxu0 0
        %1406 = vmatpush1.bf16.msra.mxu0 %v1375
        %1407 = vmatprep.subr.bf16.mxu0 0
        %1408 = vmatpush2.bf16.msra.mxu0 0
        %1409 = vmatprep.subr.bf16.mxu0 0
        %1410 = vmatpush2.bf16.msra.mxu0 0
        %1411 = vmatprep.subr.bf16.mxu0 0
        %1412 = vmatpush2.bf16.msra.mxu0 0
        %1413 = vmatprep.subr.bf16.mxu0 0
        %1414 = vmatpush2.bf16.msra.mxu0 0
        %1415 = vmatprep.subr.bf16.mxu0 0
        %1416 = vmatpush2.bf16.msra.mxu0 0
        %1417 = vmatprep.subr.bf16.mxu0 0
        %1418 = vmatpush2.bf16.msra.mxu0 0
        %1419 = vmatprep.subr.bf16.mxu0 0
        %1420 = vmatpush2.bf16.msra.mxu0 0
        %1421 = vmatprep.subr.bf16.mxu0 0
        %1422 = vmatpush2.bf16.msra.mxu0 0
        %1423 = vmatprep.mubr.bf16.mxu0 0
        %1424 = vmatmul.mubr.bf16.gmra.mxu0 %v1320
        %v1425 = vpop.f32.mrf.mxu0
        %v1426 = vadd.f32 %v1342, %v1425
        %v1427 = vpop.f32.mrf.mxu0
        %v1428 = vpop.f32.mrf.mxu0
        %v1429 = vpop.f32.mrf.mxu0
        %1430 = vdwg.mxu0
        %v1431 = vmax.f32 %v1426, 0.0
        %v1432 = vpack.c.bf16 %v1431, %v1431
        %1433 = vst [vmem:[%s303] sm:$0x3] %v1432
        %s1434 = sand.u32 %s119, 1
        %s1435 = scalar_lea.sflag [#allocation7], %s1434
        %s1436 = sand.u32 %s119, 1
        %s1437 = smul.addr %s1436, 128
        %s1438 = scalar_lea.vmem [#allocation6], %s1437
        %s1439 = sand.u32 %s27, 1
        %s1440 = scalar_lea.sflag [#allocation9], %s1439
        %s1441 = sand.u32 %s147, 1
        %s1442 = smul.addr %s1441, 32
        %s1443 = scalar_lea.vmem [#allocation8], %s1442
        %s1444 = sand.u32 %s27, 1
        %s1445 = scalar_lea.sflag [#allocation9], %s1444
        %s1446 = sand.u32 %s175, 1
        %s1447 = smul.addr %s1446, 8
        %s1448 = scalar_lea.vmem [#allocation10], %s1447
        %s1449 = sand.u32 %s203, 1
        %s1450 = scalar_lea.sflag [#allocation12], %s1449
        %s1451 = sand.u32 %s203, 1
        %s1452 = smul.addr %s1451, 2
        %s1453 = scalar_lea.vmem [#allocation11], %s1452
        // Predicated region
        $region33: #{tpu_custom_call.1} parent=31 // pred_check
          %p1454 = pneg %p129
        $region34: #{tpu_custom_call.1} parent=31 // pred_check_branch
          %1456 = sbr.rel (%p1454) target = $region36
        $region35: #{tpu_custom_call.1} parent=31 // pred_region
          %s1457 = smul.u32 32, %s32
          %s1459 = ssub.s32 2048, 2048
          %1460 = vsyncadd %s1435, %s1459
          %s1461 = smul.addr %s31, 32
          %s1462 = sadd.s32 %s1457, %s1461
          %s1463 = smul.addr %s1462, 64
          %s1464 = scalar_lea.hbm %s3, %s1463
          %s1465 = sshll.u32 %s1438, 4
          %s1466 = int_to_ptr.vmem [resolvable:$true] %s1465
          %1471 = dma.vmem_to_hbm [thread:$0]  %s1466, 2048, %s1464, %s1435, 64, 64, 4
        $region36: #{tpu_custom_call.1} parent=31 // pred_fallthru
          _
        // Predicated region
        $region37: #{tpu_custom_call.1} parent=31 // pred_check
          %p1472 = pneg %p157
        $region38: #{tpu_custom_call.1} parent=31 // pred_check_branch
          %1474 = sbr.rel (%p1472) target = $region40
        $region39: #{tpu_custom_call.1} parent=31 // pred_region
          %s1475 = smul.u32 8, %s32
          %s1477 = ssub.s32 512, 512
          %1478 = vsyncadd %s1440, %s1477
          %s1479 = smul.addr %s31, 8
          %s1480 = sadd.s32 %s1475, %s1479
          %s1481 = smul.addr %s1480, 64
          %s1482 = scalar_lea.hbm %s4, %s1481
          %s1483 = sshll.u32 %s1443, 4
          %s1484 = int_to_ptr.vmem [resolvable:$true] %s1483
          %1489 = dma.vmem_to_hbm [thread:$0]  %s1484, 512, %s1482, %s1440, 64, 64, 4
        $region40: #{tpu_custom_call.1} parent=31 // pred_fallthru
          _
        // Predicated region
        $region41: #{tpu_custom_call.1} parent=31 // pred_check
          %p1490 = pneg %p185
        $region42: #{tpu_custom_call.1} parent=31 // pred_check_branch
          %1492 = sbr.rel (%p1490) target = $region44
        $region43: #{tpu_custom_call.1} parent=31 // pred_region
          %s1493 = smul.u32 2, %s32
          %s1495 = ssub.s32 128, 128
          %1496 = vsyncadd %s1445, %s1495
          %s1497 = smul.addr %s31, 2
          %s1498 = sadd.s32 %s1493, %s1497
          %s1499 = smul.addr %s1498, 64
          %s1500 = scalar_lea.hbm %s5, %s1499
          %s1501 = sshll.u32 %s1448, 4
          %s1502 = int_to_ptr.vmem [resolvable:$true] %s1501
          %1507 = dma.vmem_to_hbm [thread:$0]  %s1502, 128, %s1500, %s1445, 64, 64, 4
        $region44: #{tpu_custom_call.1} parent=31 // pred_fallthru
          _
        // Predicated region
        $region45: #{tpu_custom_call.1} parent=31 // pred_check
          %p1508 = pneg %p213
        $region46: #{tpu_custom_call.1} parent=31 // pred_check_branch
          %1510 = sbr.rel (%p1508) target = $region48
        $region47: #{tpu_custom_call.1} parent=31 // pred_region
          %s1512 = ssub.s32 32, 32
          %1513 = vsyncadd %s1450, %s1512
          %s1514 = sadd.s32 %s32, %s31
          %s1515 = smul.addr %s1514, 32
          %s1516 = scalar_lea.hbm %s6, %s1515
          %s1518 = sshll.u32 %s1453, 4
          %s1519 = int_to_ptr.vmem [resolvable:$true] %s1518
          %1521 = dma.vmem_to_hbm [thread:$0]  %s1519, 32, %s1516, %s1450
        $region48: #{tpu_custom_call.1} parent=31 // pred_fallthru
          _
      $region32: #{tpu_custom_call.1} parent=5 // pred_fallthru
        _
      %p1522 = scmp.le.s32.totalorder 2, %s22
      // Predicated region
      $region49: #{tpu_custom_call.1} parent=5 // pred_check
        %p1523 = pneg %p1522
      $region50: #{tpu_custom_call.1} parent=5 // pred_check_branch
        %1525 = sbr.rel (%p1523) target = $region52
      $region51: #{tpu_custom_call.1} parent=5 // pred_region
        %s1526 = ssub.s32 %s22, 2
        // Predicated region
        $region53: #{tpu_custom_call.1} parent=51 // pred_check
          %p1527 = pneg %p135
        $region54: #{tpu_custom_call.1} parent=51 // pred_check_branch
          %1529 = sbr.rel (%p1527) target = $region56
        $region55: #{tpu_custom_call.1} parent=51 // pred_region
          %s1530 = sand.u32 %s120, 1
          %s1531 = scalar_lea.sflag [#allocation7], %s1530
          %s1532 = sand.u32 %s120, 1
          %s1533 = smul.addr %s1532, 128
          %s1534 = scalar_lea.vmem [#allocation6], %s1533
          %1535 = dma.done %s1531, 2048
        $region56: #{tpu_custom_call.1} parent=51 // pred_fallthru
          _
        // Predicated region
        $region57: #{tpu_custom_call.1} parent=51 // pred_check
          %p1536 = pneg %p163
        $region58: #{tpu_custom_call.1} parent=51 // pred_check_branch
          %1538 = sbr.rel (%p1536) target = $region60
        $region59: #{tpu_custom_call.1} parent=51 // pred_region
          %s1539 = sand.u32 %s28, 1
          %s1540 = scalar_lea.sflag [#allocation9], %s1539
          %s1541 = sand.u32 %s148, 1
          %s1542 = smul.addr %s1541, 32
          %s1543 = scalar_lea.vmem [#allocation8], %s1542
          %1544 = dma.done %s1540, 512
        $region60: #{tpu_custom_call.1} parent=51 // pred_fallthru
          _
        // Predicated region
        $region61: #{tpu_custom_call.1} parent=51 // pred_check
          %p1545 = pneg %p191
        $region62: #{tpu_custom_call.1} parent=51 // pred_check_branch
          %1547 = sbr.rel (%p1545) target = $region64
        $region63: #{tpu_custom_call.1} parent=51 // pred_region
          %s1548 = sand.u32 %s28, 1
          %s1549 = scalar_lea.sflag [#allocation9], %s1548
          %s1550 = sand.u32 %s176, 1
          %s1551 = smul.addr %s1550, 8
          %s1552 = scalar_lea.vmem [#allocation10], %s1551
          %1553 = dma.done %s1549, 128
        $region64: #{tpu_custom_call.1} parent=51 // pred_fallthru
          _
        // Predicated region
        $region65: #{tpu_custom_call.1} parent=51 // pred_check
          %p1554 = pneg %p219
        $region66: #{tpu_custom_call.1} parent=51 // pred_check_branch
          %1556 = sbr.rel (%p1554) target = $region68
        $region67: #{tpu_custom_call.1} parent=51 // pred_region
          %s1557 = sand.u32 %s204, 1
          %s1558 = scalar_lea.sflag [#allocation12], %s1557
          %s1559 = sand.u32 %s204, 1
          %s1560 = smul.addr %s1559, 2
          %s1561 = scalar_lea.vmem [#allocation11], %s1560
          %1562 = dma.done %s1558, 32
        $region68: #{tpu_custom_call.1} parent=51 // pred_fallthru
          _
      $region52: #{tpu_custom_call.1} parent=5 // pred_fallthru
        _
    $region6: #{tpu_custom_call.1} parent=1 // loop_footer
      %s26 = sadd.s32 1, %s22
    $region7: #{tpu_custom_call.1} parent=1 // loop_footer_branch
      %21 = sbr.rel target = $region3
    $region8: #{tpu_custom_call.1} parent=1 // loop_exit
      _
    %1563 = vsyncpa [#allocation7], 1
    %s1564 = scalar_lea.sflag [#allocation7], 1
    %1565 = vsyncpa %s1564, 1
    %1566 = vsyncpa [#allocation9], 1
    %s1567 = scalar_lea.sflag [#allocation9], 1
    %1568 = vsyncpa %s1567, 1
    %1569 = vsyncpa [#allocation12], 1
    %s1570 = scalar_lea.sflag [#allocation12], 1
    %1571 = vsyncpa %s1570, 1

</llo_original>
